<compile_context>
chip_gen: v7x
topology: tpu7x:2x2x1
jax: 0.10.0
libtpu: 0.0.40
codegen_flags: <defaults>
</compile_context>

<pallas_src>
import math

import numpy as np
import jax
import jax.numpy as jnp
from jax.experimental import pallas as pl
from jax.experimental.pallas import tpu as pltpu  # noqa: F401  (TPU backend)

HIDDEN = 32
HEADS = 4
HEAD_DIM = HIDDEN // HEADS
FFN = 4 * HIDDEN
NUM_LAYERS = 2
OUT_DIM = 6
EPS = 1e-5          # PyTorch LayerNorm default
NEG_INF = -1e30
LANES = 128


def _round8(n):
    return ((n + 7) // 8) * 8


def _slab_layout(num_layers, S, B, out_dim):
    """Row offsets shared by the host-side packer and the kernel."""
    D, F = HIDDEN, FFN
    R = S * B
    lay = {}
    # ---- slab A (f32) ----
    r = 0
    lay["norm"] = r; r += 2                       # norm_w, norm_b
    lay["layer_vec"] = []
    for _ in range(num_layers):                   # n1w n1b n2w n2b bqkv bo b1 b2
        lay["layer_vec"].append(r); r += 8
    lay["head_b"] = r; r += 1
    r = _round8(r)
    lay["head_w"] = r; r += _round8(D)            # (D, out_dim)
    lay["pool"] = r;  r += _round8(B)             # (B, R) mean-pool matrix
    lay["mask"] = r;  r += _round8(R)             # (R, R) additive attn mask
    lay["rows_a"] = r
    # ---- slab B (bf16) ----
    m = 0
    lay["layer_mat"] = []
    for _ in range(num_layers):                   # wqkv | wo_bd | w1 | w2
        lay["layer_mat"].append(m); m += D + D + D + F
    lay["rows_b"] = m
    lay["out_rows"] = _round8(R + B)
    return lay


def _layernorm(x, w, b):
    # x: (R, D); w, b: (1, D)  -- all f32
    mu = jnp.mean(x, axis=-1, keepdims=True)
    xc = x - mu
    var = jnp.mean(xc * xc, axis=-1, keepdims=True)
    inv = jax.lax.rsqrt(var + EPS)
    return xc * inv * w + b


def _make_fused_kernel(S, B, num_layers, out_dim):
    """Fused forward: x is (S*B, D) with row r = s*B + b (seq-first flatten)."""
    D, F, H, HD = HIDDEN, FFN, HEADS, HEAD_DIM
    R = S * B
    lay = _slab_layout(num_layers, S, B, out_dim)
    bf16 = jnp.bfloat16

    def kernel(x_ref, a_ref, w_ref, out_ref):
        x = x_ref[...]                                   # (R, D) f32 residual stream
        A = a_ref[...]                                   # (rows_a, 128) f32

        nw = A[lay["norm"] + 0:lay["norm"] + 1, :D]      # shared Model.norm
        nb = A[lay["norm"] + 1:lay["norm"] + 2, :D]
        bias = A[lay["mask"]:lay["mask"] + R, :R]        # 0 / -1e30 additive mask

        for l in range(num_layers):
            bv = lay["layer_vec"][l]
            bm = lay["layer_mat"][l]
            n1w = A[bv + 0:bv + 1, :D]; n1b = A[bv + 1:bv + 2, :D]
            n2w = A[bv + 2:bv + 3, :D]; n2b = A[bv + 3:bv + 4, :D]
            bqkv = A[bv + 4:bv + 5, :3 * D]              # q part pre-scaled
            bo = A[bv + 5:bv + 6, :D]
            b1 = A[bv + 6:bv + 7, :F]
            b2 = A[bv + 7:bv + 8, :D]
            wqkv = w_ref[bm:bm + D, :3 * D]              # bf16 (D,3D), q cols pre-scaled
            wo_bd = w_ref[bm + D:bm + 2 * D, :]          # bf16 (D, H*D) block-diagonal
            w1 = w_ref[bm + 2 * D:bm + 3 * D, :F]        # bf16 (D, F)
            w2 = w_ref[bm + 3 * D:bm + 3 * D + F, :D]    # bf16 (F, D)

            # outer shared LayerNorm (self.norm)
            y = _layernorm(x, nw, nb)

            # ---- self-attention block (pre-norm) ----
            a_in = _layernorm(y, n1w, n1b)
            qkv = jnp.dot(a_in.astype(bf16), wqkv,
                          preferred_element_type=jnp.float32) + bqkv
            q = qkv[:, 0:D].astype(bf16)
            k = qkv[:, D:2 * D].astype(bf16)
            v = qkv[:, 2 * D:3 * D].astype(bf16)
            # All heads' value->output projections in one lane-dense matmul
            # (independent of the softmax -> overlaps with EUP exp/recip).
            u = jnp.dot(v, wo_bd, preferred_element_type=jnp.float32).astype(bf16)

            attn_out = None
            for h in range(H):                            # static unroll over heads
                lo = h * HD
                s = jax.lax.dot_general(q[:, lo:lo + HD], k[:, lo:lo + HD],
                                        (((1,), (1,)), ((), ())),
                                        preferred_element_type=jnp.float32)
                s = s + bias
                s = s - jnp.max(s, axis=-1, keepdims=True)
                p = jnp.exp(s)                            # masked cols underflow to 0
                p = p * pl.reciprocal(jnp.sum(p, axis=-1, keepdims=True), approx=True)
                contrib = jnp.dot(p.astype(bf16), u[:, h * D:(h + 1) * D],
                                  preferred_element_type=jnp.float32)
                attn_out = contrib if attn_out is None else attn_out + contrib
            z1 = y + attn_out + bo                        # residual inside the layer

            # ---- feed-forward block (pre-norm) ----
            f_in = _layernorm(z1, n2w, n2b)
            h1 = jnp.maximum(
                jnp.dot(f_in.astype(bf16), w1, preferred_element_type=jnp.float32) + b1,
                0.0)
            ff = jnp.dot(h1.astype(bf16), w2,
                         preferred_element_type=jnp.float32) + b2

            # transformer_encode residual: x = last_x + layer(norm(last_x))
            x = x + z1 + ff

        # ---- epilogue: mean-pool + node head (f32, exact mean of stored emb) ----
        pool = A[lay["pool"]:lay["pool"] + B, :R]                 # (B, R)
        hw = A[lay["head_w"]:lay["head_w"] + D, :out_dim]         # (D, O)
        hb = A[lay["head_b"]:lay["head_b"] + 1, :out_dim]         # (1, O)
        inst = jnp.dot(pool, x, preferred_element_type=jnp.float32)       # (B, D)
        pred = jnp.dot(inst, hw, preferred_element_type=jnp.float32) + hb  # (B, O)

        # Single lane-dense output slab: one unmasked whole-block store.
        emb_rows = jnp.concatenate(
            [x, jnp.zeros((R, LANES - D), jnp.float32)], axis=-1)
        tail_rows = jnp.concatenate(
            [inst, pred, jnp.zeros((B, LANES - D - out_dim), jnp.float32)], axis=-1)
        blocks = [emb_rows, tail_rows]
        pad = lay["out_rows"] - (R + B)
        if pad:
            blocks.append(jnp.zeros((pad, LANES), jnp.float32))
        out_ref[...] = jnp.concatenate(blocks, axis=0)

    return kernel, lay


@jax.jit
def model_forward(pattern_feat_sbd, slab_a, slab_b):
    """Mirrors Model.encode_node after pattern_encoder, eval mode.

    Returns (pred, instance_emb, pattern_emb, commit_loss)."""
    S, B, D = pattern_feat_sbd.shape
    R = S * B
    # Free row-major merge (no transpose, no extra HBM pass): row r = s*B + b.
    x2d = pattern_feat_sbd.reshape(R, D)

    kernel, lay = _make_fused_kernel(S, B, NUM_LAYERS, OUT_DIM)
    out = pl.pallas_call(
        kernel,
        out_shape=jax.ShapeDtypeStruct((lay["out_rows"], LANES), jnp.float32),
    )(x2d, slab_a, slab_b)

    pattern_emb = out[:R, :D].reshape(S, B, D)        # back to seq-first, free
    instance_emb = out[R:R + B, :D]
    pred = out[R:R + B, D:D + OUT_DIM]
    commit_loss = jnp.float32(0.0)                    # use_vq=False
    return pred, instance_emb, pattern_emb, commit_loss


def pack_params(params, S, B):
    """Host-side packing of all weights into two DMA slabs.

    slab_a (f32): LN params, all biases, head weight, pool matrix, attn mask.
    slab_b (bf16): per-layer [ wqkv | block-diag Wo | W1 | W2 ].
    1/sqrt(head_dim) is folded into the q columns of wqkv / bqkv.
    """
    D, F, H, HD = HIDDEN, FFN, HEADS, HEAD_DIM
    R = S * B
    O = int(np.asarray(params["head_b"]).reshape(-1).shape[0])
    num_layers = len(params["layers"])
    lay = _slab_layout(num_layers, S, B, O)
    scale = 1.0 / math.sqrt(HD)

    slab_a = np.zeros((lay["rows_a"], LANES), np.float32)

    def put_vec(row, v):
        v = np.asarray(v, np.float32).reshape(-1)
        slab_a[row, :v.shape[0]] = v

    put_vec(lay["norm"] + 0, params["norm_w"])
    put_vec(lay["norm"] + 1, params["norm_b"])
    for l, lp in enumerate(params["layers"]):
        base = lay["layer_vec"][l]
        bqkv = np.asarray(lp["bqkv"], np.float32).reshape(-1).copy()
        bqkv[:D] *= scale
        put_vec(base + 0, lp["n1w"]); put_vec(base + 1, lp["n1b"])
        put_vec(base + 2, lp["n2w"]); put_vec(base + 3, lp["n2b"])
        put_vec(base + 4, bqkv);      put_vec(base + 5, lp["bo"])
        put_vec(base + 6, lp["b1"]);  put_vec(base + 7, lp["b2"])
    put_vec(lay["head_b"], params["head_b"])

    slab_a[lay["head_w"]:lay["head_w"] + D, :O] = np.asarray(params["head_w"], np.float32)

    # Mean-pool matrix: inst[b] = mean over the S patterns of node b (r % B == b).
    cols = np.arange(R)
    pool = np.zeros((B, R), np.float32)
    for b in range(B):
        pool[b, cols % B == b] = 1.0 / S
    slab_a[lay["pool"]:lay["pool"] + B, :R] = pool

    # Additive attention mask: rows r, r' interact only when r % B == r' % B.
    same = (cols[:, None] % B) == (cols[None, :] % B)
    slab_a[lay["mask"]:lay["mask"] + R, :R] = np.where(same, 0.0, NEG_INF)

    slab_b = np.zeros((lay["rows_b"], LANES), np.float32)
    for l, lp in enumerate(params["layers"]):
        base = lay["layer_mat"][l]
        wqkv = np.asarray(lp["wqkv"], np.float32).copy()      # (D, 3D), x @ W layout
        wqkv[:, :D] *= scale
        slab_b[base:base + D, :3 * D] = wqkv
        wo = np.asarray(lp["wo"], np.float32)                 # (D, D)
        wo_bd = np.zeros((D, H * D), np.float32)              # block-diagonal expansion
        for h in range(H):
            wo_bd[h * HD:(h + 1) * HD, h * D:(h + 1) * D] = wo[h * HD:(h + 1) * HD, :]
        slab_b[base + D:base + 2 * D, :H * D] = wo_bd
        slab_b[base + 2 * D:base + 3 * D, :F] = np.asarray(lp["w1"], np.float32)
        slab_b[base + 3 * D:base + 3 * D + F, :D] = np.asarray(lp["w2"], np.float32)

    return jnp.asarray(slab_a, jnp.float32), jnp.asarray(slab_b, jnp.bfloat16)


def init_params(key):
    # NOTE: weights are stored "x @ W" style (D_in, D_out); real PyTorch
    # weights (out, in) must be transposed before loading here.
    D, F = HIDDEN, FFN
    std = 0.05

    def nrm(k, shape):
        return std * jax.random.normal(k, shape, jnp.float32)

    keys = jax.random.split(key, NUM_LAYERS + 1)
    layers = []
    for i in range(NUM_LAYERS):
        ks = jax.random.split(keys[i], 8)
        layers.append(dict(
            n1w=jnp.ones((1, D), jnp.float32), n1b=jnp.zeros((1, D), jnp.float32),
            n2w=jnp.ones((1, D), jnp.float32), n2b=jnp.zeros((1, D), jnp.float32),
            wqkv=nrm(ks[0], (D, 3 * D)), bqkv=nrm(ks[1], (1, 3 * D)),
            wo=nrm(ks[2], (D, D)),       bo=nrm(ks[3], (1, D)),
            w1=nrm(ks[4], (D, F)),       b1=nrm(ks[5], (1, F)),
            w2=nrm(ks[6], (F, D)),       b2=nrm(ks[7], (1, D)),
        ))
    kh1, kh2 = jax.random.split(keys[-1])
    return dict(
        layers=layers,
        norm_w=jnp.ones((1, D), jnp.float32),
        norm_b=jnp.zeros((1, D), jnp.float32),
        head_w=nrm(kh1, (D, OUT_DIM)),
        head_b=nrm(kh2, (1, OUT_DIM)),
    )


if __name__ == "__main__":
    key = jax.random.PRNGKey(0)
    k_feat, k_par = jax.random.split(key)

    S, B = 8, 2                                   # num_patterns, num_nodes
    # pattern_feat: output of PatternEncoder, seq-first (S, B, HIDDEN)
    pattern_feat = jax.random.normal(k_feat, (S, B, HIDDEN), jnp.float32)
    params = init_params(k_par)
    slab_a, slab_b = pack_params(params, S, B)

    pred, instance_emb, pattern_emb, commit_loss = model_forward(
        pattern_feat, slab_a, slab_b)
    jax.block_until_ready((pred, instance_emb, pattern_emb, commit_loss))

    assert pred.shape == (B, OUT_DIM)
    assert instance_emb.shape == (B, HIDDEN)
    assert pattern_emb.shape == (S, B, HIDDEN)
    print("KERNEL_OK")
</pallas_src>

<mosaic_0001>
module attributes {stable_mosaic.version = 11 : i64} {
  func.func @kernel(%arg0: memref<16x32xf32, #tpu.memory_space<vmem>>, %arg1: memref<80x128xf32, #tpu.memory_space<vmem>>, %arg2: memref<448x128xbf16, #tpu.memory_space<vmem>>, %arg3: memref<24x128xf32, #tpu.memory_space<vmem>>) attributes {dimension_semantics = [], scalar_prefetch = 0 : i64, scratch_operands = 0 : i64, tpu.core_type = #tpu.core_type<tc>} {
    %c0 = arith.constant 0 : index
    %c0_0 = arith.constant 0 : index
    %0 = vector.load %arg0[%c0, %c0_0] : memref<16x32xf32, #tpu.memory_space<vmem>>, vector<16x32xf32>
    %c0_1 = arith.constant 0 : index
    %c0_2 = arith.constant 0 : index
    %1 = vector.load %arg1[%c0_1, %c0_2] : memref<80x128xf32, #tpu.memory_space<vmem>>, vector<80x128xf32>
    %2 = vector.extract_strided_slice %1 {offsets = [0, 0], sizes = [1, 32], strides = [1, 1]} : vector<80x128xf32> to vector<1x32xf32>
    %3 = vector.extract_strided_slice %1 {offsets = [1, 0], sizes = [1, 32], strides = [1, 1]} : vector<80x128xf32> to vector<1x32xf32>
    %4 = vector.extract_strided_slice %1 {offsets = [64, 0], sizes = [16, 16], strides = [1, 1]} : vector<80x128xf32> to vector<16x16xf32>
    %5 = vector.extract_strided_slice %1 {offsets = [2, 0], sizes = [1, 32], strides = [1, 1]} : vector<80x128xf32> to vector<1x32xf32>
    %6 = vector.extract_strided_slice %1 {offsets = [3, 0], sizes = [1, 32], strides = [1, 1]} : vector<80x128xf32> to vector<1x32xf32>
    %7 = vector.extract_strided_slice %1 {offsets = [4, 0], sizes = [1, 32], strides = [1, 1]} : vector<80x128xf32> to vector<1x32xf32>
    %8 = vector.extract_strided_slice %1 {offsets = [5, 0], sizes = [1, 32], strides = [1, 1]} : vector<80x128xf32> to vector<1x32xf32>
    %9 = vector.extract_strided_slice %1 {offsets = [6, 0], sizes = [1, 96], strides = [1, 1]} : vector<80x128xf32> to vector<1x96xf32>
    %10 = vector.extract_strided_slice %1 {offsets = [7, 0], sizes = [1, 32], strides = [1, 1]} : vector<80x128xf32> to vector<1x32xf32>
    %11 = vector.extract_strided_slice %1 {offsets = [8, 0], sizes = [1, 128], strides = [1, 1]} : vector<80x128xf32> to vector<1x128xf32>
    %12 = vector.extract_strided_slice %1 {offsets = [9, 0], sizes = [1, 32], strides = [1, 1]} : vector<80x128xf32> to vector<1x32xf32>
    %c0_3 = arith.constant 0 : index
    %c0_4 = arith.constant 0 : index
    %13 = vector.load %arg2[%c0_3, %c0_4] : memref<448x128xbf16, #tpu.memory_space<vmem>>, vector<32x96xbf16>
    %c32 = arith.constant 32 : index
    %c0_5 = arith.constant 0 : index
    %14 = vector.load %arg2[%c32, %c0_5] : memref<448x128xbf16, #tpu.memory_space<vmem>>, vector<32x128xbf16>
    %c64 = arith.constant 64 : index
    %c0_6 = arith.constant 0 : index
    %15 = vector.load %arg2[%c64, %c0_6] : memref<448x128xbf16, #tpu.memory_space<vmem>>, vector<32x128xbf16>
    %c96 = arith.constant 96 : index
    %c0_7 = arith.constant 0 : index
    %16 = vector.load %arg2[%c96, %c0_7] : memref<448x128xbf16, #tpu.memory_space<vmem>>, vector<128x32xbf16>
    %cst = arith.constant dense<0.000000e+00> : vector<16xf32>
    %17 = vector.multi_reduction <add>, %0, %cst [1] : vector<16x32xf32> to vector<16xf32>
    %18 = vector.shape_cast %17 : vector<16xf32> to vector<16x1xf32>
    %cst_8 = arith.constant 3.200000e+01 : f32
    %19 = vector.broadcast %cst_8 : f32 to vector<16x1xf32>
    %20 = arith.divf %18, %19 : vector<16x1xf32>
    %21 = vector.broadcast %20 : vector<16x1xf32> to vector<16x32xf32>
    %22 = arith.subf %0, %21 : vector<16x32xf32>
    %23 = arith.mulf %22, %22 : vector<16x32xf32>
    %cst_9 = arith.constant dense<0.000000e+00> : vector<16xf32>
    %24 = vector.multi_reduction <add>, %23, %cst_9 [1] : vector<16x32xf32> to vector<16xf32>
    %25 = vector.shape_cast %24 : vector<16xf32> to vector<16x1xf32>
    %cst_10 = arith.constant 3.200000e+01 : f32
    %26 = vector.broadcast %cst_10 : f32 to vector<16x1xf32>
    %27 = arith.divf %25, %26 : vector<16x1xf32>
    %cst_11 = arith.constant 9.99999974E-6 : f32
    %28 = vector.broadcast %cst_11 : f32 to vector<16x1xf32>
    %29 = arith.addf %27, %28 : vector<16x1xf32>
    %30 = math.rsqrt %29 : vector<16x1xf32>
    %31 = vector.broadcast %30 : vector<16x1xf32> to vector<16x32xf32>
    %32 = arith.mulf %22, %31 : vector<16x32xf32>
    %33 = vector.broadcast %2 : vector<1x32xf32> to vector<16x32xf32>
    %34 = arith.mulf %32, %33 : vector<16x32xf32>
    %35 = vector.broadcast %3 : vector<1x32xf32> to vector<16x32xf32>
    %36 = arith.addf %34, %35 : vector<16x32xf32>
    %cst_12 = arith.constant dense<0.000000e+00> : vector<16xf32>
    %37 = vector.multi_reduction <add>, %36, %cst_12 [1] : vector<16x32xf32> to vector<16xf32>
    %38 = vector.shape_cast %37 : vector<16xf32> to vector<16x1xf32>
    %cst_13 = arith.constant 3.200000e+01 : f32
    %39 = vector.broadcast %cst_13 : f32 to vector<16x1xf32>
    %40 = arith.divf %38, %39 : vector<16x1xf32>
    %41 = vector.broadcast %40 : vector<16x1xf32> to vector<16x32xf32>
    %42 = arith.subf %36, %41 : vector<16x32xf32>
    %43 = arith.mulf %42, %42 : vector<16x32xf32>
    %cst_14 = arith.constant dense<0.000000e+00> : vector<16xf32>
    %44 = vector.multi_reduction <add>, %43, %cst_14 [1] : vector<16x32xf32> to vector<16xf32>
    %45 = vector.shape_cast %44 : vector<16xf32> to vector<16x1xf32>
    %cst_15 = arith.constant 3.200000e+01 : f32
    %46 = vector.broadcast %cst_15 : f32 to vector<16x1xf32>
    %47 = arith.divf %45, %46 : vector<16x1xf32>
    %cst_16 = arith.constant 9.99999974E-6 : f32
    %48 = vector.broadcast %cst_16 : f32 to vector<16x1xf32>
    %49 = arith.addf %47, %48 : vector<16x1xf32>
    %50 = math.rsqrt %49 : vector<16x1xf32>
    %51 = vector.broadcast %50 : vector<16x1xf32> to vector<16x32xf32>
    %52 = arith.mulf %42, %51 : vector<16x32xf32>
    %53 = vector.broadcast %5 : vector<1x32xf32> to vector<16x32xf32>
    %54 = arith.mulf %52, %53 : vector<16x32xf32>
    %55 = vector.broadcast %6 : vector<1x32xf32> to vector<16x32xf32>
    %56 = arith.addf %54, %55 : vector<16x32xf32>
    %57 = arith.truncf %56 : vector<16x32xf32> to vector<16x32xbf16>
    %cst_17 = arith.constant dense<0.000000e+00> : vector<16x96xf32>
    %58 = tpu.matmul %57, %13, %cst_17 {dimension_numbers = #tpu.dot_dimension_numbers<[1], [0], [0], [1], [0, 0, 1, 1], [], []>} : vector<16x32xbf16>, vector<32x96xbf16>, vector<16x96xf32> -> vector<16x96xf32>
    %59 = vector.broadcast %9 : vector<1x96xf32> to vector<16x96xf32>
    %60 = arith.addf %58, %59 : vector<16x96xf32>
    %61 = vector.extract_strided_slice %60 {offsets = [0, 0], sizes = [16, 32], strides = [1, 1]} : vector<16x96xf32> to vector<16x32xf32>
    %62 = arith.truncf %61 : vector<16x32xf32> to vector<16x32xbf16>
    %63 = vector.extract_strided_slice %60 {offsets = [0, 32], sizes = [16, 32], strides = [1, 1]} : vector<16x96xf32> to vector<16x32xf32>
    %64 = arith.truncf %63 : vector<16x32xf32> to vector<16x32xbf16>
    %65 = vector.extract_strided_slice %60 {offsets = [0, 64], sizes = [16, 32], strides = [1, 1]} : vector<16x96xf32> to vector<16x32xf32>
    %66 = arith.truncf %65 : vector<16x32xf32> to vector<16x32xbf16>
    %cst_18 = arith.constant dense<0.000000e+00> : vector<16x128xf32>
    %67 = tpu.matmul %66, %14, %cst_18 {dimension_numbers = #tpu.dot_dimension_numbers<[1], [0], [0], [1], [0, 0, 1, 1], [], []>} : vector<16x32xbf16>, vector<32x128xbf16>, vector<16x128xf32> -> vector<16x128xf32>
    %68 = arith.truncf %67 : vector<16x128xf32> to vector<16x128xbf16>
    %69 = vector.extract_strided_slice %62 {offsets = [0, 0], sizes = [16, 8], strides = [1, 1]} : vector<16x32xbf16> to vector<16x8xbf16>
    %70 = vector.extract_strided_slice %64 {offsets = [0, 0], sizes = [16, 8], strides = [1, 1]} : vector<16x32xbf16> to vector<16x8xbf16>
    %cst_19 = arith.constant dense<0.000000e+00> : vector<16x16xf32>
    %71 = tpu.matmul %69, %70, %cst_19 {dimension_numbers = #tpu.dot_dimension_numbers<[1], [1], [0], [0], [0, 0, 1, 0], [], []>} : vector<16x8xbf16>, vector<16x8xbf16>, vector<16x16xf32> -> vector<16x16xf32>
    %72 = arith.addf %71, %4 : vector<16x16xf32>
    %cst_20 = arith.constant dense<0xFF800000> : vector<16xf32>
    %73 = vector.multi_reduction <maximumf>, %72, %cst_20 [1] : vector<16x16xf32> to vector<16xf32>
    %74 = vector.shape_cast %73 : vector<16xf32> to vector<16x1xf32>
    %75 = vector.broadcast %74 : vector<16x1xf32> to vector<16x16xf32>
    %76 = arith.subf %72, %75 : vector<16x16xf32>
    %77 = math.exp %76 : vector<16x16xf32>
    %cst_21 = arith.constant dense<0.000000e+00> : vector<16xf32>
    %78 = vector.multi_reduction <add>, %77, %cst_21 [1] : vector<16x16xf32> to vector<16xf32>
    %79 = vector.shape_cast %78 : vector<16xf32> to vector<16x1xf32>
    %80 = tpu.reciprocal %79 {approx = true} : vector<16x1xf32> -> vector<16x1xf32>
    %81 = vector.broadcast %80 : vector<16x1xf32> to vector<16x16xf32>
    %82 = arith.mulf %77, %81 : vector<16x16xf32>
    %83 = arith.truncf %82 : vector<16x16xf32> to vector<16x16xbf16>
    %84 = vector.extract_strided_slice %68 {offsets = [0, 0], sizes = [16, 32], strides = [1, 1]} : vector<16x128xbf16> to vector<16x32xbf16>
    %cst_22 = arith.constant dense<0.000000e+00> : vector<16x32xf32>
    %85 = tpu.matmul %83, %84, %cst_22 {dimension_numbers = #tpu.dot_dimension_numbers<[1], [0], [0], [1], [0, 0, 1, 1], [], []>} : vector<16x16xbf16>, vector<16x32xbf16>, vector<16x32xf32> -> vector<16x32xf32>
    %86 = vector.extract_strided_slice %62 {offsets = [0, 8], sizes = [16, 8], strides = [1, 1]} : vector<16x32xbf16> to vector<16x8xbf16>
    %87 = vector.extract_strided_slice %64 {offsets = [0, 8], sizes = [16, 8], strides = [1, 1]} : vector<16x32xbf16> to vector<16x8xbf16>
    %cst_23 = arith.constant dense<0.000000e+00> : vector<16x16xf32>
    %88 = tpu.matmul %86, %87, %cst_23 {dimension_numbers = #tpu.dot_dimension_numbers<[1], [1], [0], [0], [0, 0, 1, 0], [], []>} : vector<16x8xbf16>, vector<16x8xbf16>, vector<16x16xf32> -> vector<16x16xf32>
    %89 = arith.addf %88, %4 : vector<16x16xf32>
    %cst_24 = arith.constant dense<0xFF800000> : vector<16xf32>
    %90 = vector.multi_reduction <maximumf>, %89, %cst_24 [1] : vector<16x16xf32> to vector<16xf32>
    %91 = vector.shape_cast %90 : vector<16xf32> to vector<16x1xf32>
    %92 = vector.broadcast %91 : vector<16x1xf32> to vector<16x16xf32>
    %93 = arith.subf %89, %92 : vector<16x16xf32>
    %94 = math.exp %93 : vector<16x16xf32>
    %cst_25 = arith.constant dense<0.000000e+00> : vector<16xf32>
    %95 = vector.multi_reduction <add>, %94, %cst_25 [1] : vector<16x16xf32> to vector<16xf32>
    %96 = vector.shape_cast %95 : vector<16xf32> to vector<16x1xf32>
    %97 = tpu.reciprocal %96 {approx = true} : vector<16x1xf32> -> vector<16x1xf32>
    %98 = vector.broadcast %97 : vector<16x1xf32> to vector<16x16xf32>
    %99 = arith.mulf %94, %98 : vector<16x16xf32>
    %100 = arith.truncf %99 : vector<16x16xf32> to vector<16x16xbf16>
    %101 = vector.extract_strided_slice %68 {offsets = [0, 32], sizes = [16, 32], strides = [1, 1]} : vector<16x128xbf16> to vector<16x32xbf16>
    %cst_26 = arith.constant dense<0.000000e+00> : vector<16x32xf32>
    %102 = tpu.matmul %100, %101, %cst_26 {dimension_numbers = #tpu.dot_dimension_numbers<[1], [0], [0], [1], [0, 0, 1, 1], [], []>} : vector<16x16xbf16>, vector<16x32xbf16>, vector<16x32xf32> -> vector<16x32xf32>
    %103 = arith.addf %85, %102 : vector<16x32xf32>
    %104 = vector.extract_strided_slice %62 {offsets = [0, 16], sizes = [16, 8], strides = [1, 1]} : vector<16x32xbf16> to vector<16x8xbf16>
    %105 = vector.extract_strided_slice %64 {offsets = [0, 16], sizes = [16, 8], strides = [1, 1]} : vector<16x32xbf16> to vector<16x8xbf16>
    %cst_27 = arith.constant dense<0.000000e+00> : vector<16x16xf32>
    %106 = tpu.matmul %104, %105, %cst_27 {dimension_numbers = #tpu.dot_dimension_numbers<[1], [1], [0], [0], [0, 0, 1, 0], [], []>} : vector<16x8xbf16>, vector<16x8xbf16>, vector<16x16xf32> -> vector<16x16xf32>
    %107 = arith.addf %106, %4 : vector<16x16xf32>
    %cst_28 = arith.constant dense<0xFF800000> : vector<16xf32>
    %108 = vector.multi_reduction <maximumf>, %107, %cst_28 [1] : vector<16x16xf32> to vector<16xf32>
    %109 = vector.shape_cast %108 : vector<16xf32> to vector<16x1xf32>
    %110 = vector.broadcast %109 : vector<16x1xf32> to vector<16x16xf32>
    %111 = arith.subf %107, %110 : vector<16x16xf32>
    %112 = math.exp %111 : vector<16x16xf32>
    %cst_29 = arith.constant dense<0.000000e+00> : vector<16xf32>
    %113 = vector.multi_reduction <add>, %112, %cst_29 [1] : vector<16x16xf32> to vector<16xf32>
    %114 = vector.shape_cast %113 : vector<16xf32> to vector<16x1xf32>
    %115 = tpu.reciprocal %114 {approx = true} : vector<16x1xf32> -> vector<16x1xf32>
    %116 = vector.broadcast %115 : vector<16x1xf32> to vector<16x16xf32>
    %117 = arith.mulf %112, %116 : vector<16x16xf32>
    %118 = arith.truncf %117 : vector<16x16xf32> to vector<16x16xbf16>
    %119 = vector.extract_strided_slice %68 {offsets = [0, 64], sizes = [16, 32], strides = [1, 1]} : vector<16x128xbf16> to vector<16x32xbf16>
    %cst_30 = arith.constant dense<0.000000e+00> : vector<16x32xf32>
    %120 = tpu.matmul %118, %119, %cst_30 {dimension_numbers = #tpu.dot_dimension_numbers<[1], [0], [0], [1], [0, 0, 1, 1], [], []>} : vector<16x16xbf16>, vector<16x32xbf16>, vector<16x32xf32> -> vector<16x32xf32>
    %121 = arith.addf %103, %120 : vector<16x32xf32>
    %122 = vector.extract_strided_slice %62 {offsets = [0, 24], sizes = [16, 8], strides = [1, 1]} : vector<16x32xbf16> to vector<16x8xbf16>
    %123 = vector.extract_strided_slice %64 {offsets = [0, 24], sizes = [16, 8], strides = [1, 1]} : vector<16x32xbf16> to vector<16x8xbf16>
    %cst_31 = arith.constant dense<0.000000e+00> : vector<16x16xf32>
    %124 = tpu.matmul %122, %123, %cst_31 {dimension_numbers = #tpu.dot_dimension_numbers<[1], [1], [0], [0], [0, 0, 1, 0], [], []>} : vector<16x8xbf16>, vector<16x8xbf16>, vector<16x16xf32> -> vector<16x16xf32>
    %125 = arith.addf %124, %4 : vector<16x16xf32>
    %cst_32 = arith.constant dense<0xFF800000> : vector<16xf32>
    %126 = vector.multi_reduction <maximumf>, %125, %cst_32 [1] : vector<16x16xf32> to vector<16xf32>
    %127 = vector.shape_cast %126 : vector<16xf32> to vector<16x1xf32>
    %128 = vector.broadcast %127 : vector<16x1xf32> to vector<16x16xf32>
    %129 = arith.subf %125, %128 : vector<16x16xf32>
    %130 = math.exp %129 : vector<16x16xf32>
    %cst_33 = arith.constant dense<0.000000e+00> : vector<16xf32>
    %131 = vector.multi_reduction <add>, %130, %cst_33 [1] : vector<16x16xf32> to vector<16xf32>
    %132 = vector.shape_cast %131 : vector<16xf32> to vector<16x1xf32>
    %133 = tpu.reciprocal %132 {approx = true} : vector<16x1xf32> -> vector<16x1xf32>
    %134 = vector.broadcast %133 : vector<16x1xf32> to vector<16x16xf32>
    %135 = arith.mulf %130, %134 : vector<16x16xf32>
    %136 = arith.truncf %135 : vector<16x16xf32> to vector<16x16xbf16>
    %137 = vector.extract_strided_slice %68 {offsets = [0, 96], sizes = [16, 32], strides = [1, 1]} : vector<16x128xbf16> to vector<16x32xbf16>
    %cst_34 = arith.constant dense<0.000000e+00> : vector<16x32xf32>
    %138 = tpu.matmul %136, %137, %cst_34 {dimension_numbers = #tpu.dot_dimension_numbers<[1], [0], [0], [1], [0, 0, 1, 1], [], []>} : vector<16x16xbf16>, vector<16x32xbf16>, vector<16x32xf32> -> vector<16x32xf32>
    %139 = arith.addf %121, %138 : vector<16x32xf32>
    %140 = arith.addf %36, %139 : vector<16x32xf32>
    %141 = vector.broadcast %10 : vector<1x32xf32> to vector<16x32xf32>
    %142 = arith.addf %140, %141 : vector<16x32xf32>
    %cst_35 = arith.constant dense<0.000000e+00> : vector<16xf32>
    %143 = vector.multi_reduction <add>, %142, %cst_35 [1] : vector<16x32xf32> to vector<16xf32>
    %144 = vector.shape_cast %143 : vector<16xf32> to vector<16x1xf32>
    %cst_36 = arith.constant 3.200000e+01 : f32
    %145 = vector.broadcast %cst_36 : f32 to vector<16x1xf32>
    %146 = arith.divf %144, %145 : vector<16x1xf32>
    %147 = vector.broadcast %146 : vector<16x1xf32> to vector<16x32xf32>
    %148 = arith.subf %142, %147 : vector<16x32xf32>
    %149 = arith.mulf %148, %148 : vector<16x32xf32>
    %cst_37 = arith.constant dense<0.000000e+00> : vector<16xf32>
    %150 = vector.multi_reduction <add>, %149, %cst_37 [1] : vector<16x32xf32> to vector<16xf32>
    %151 = vector.shape_cast %150 : vector<16xf32> to vector<16x1xf32>
    %cst_38 = arith.constant 3.200000e+01 : f32
    %152 = vector.broadcast %cst_38 : f32 to vector<16x1xf32>
    %153 = arith.divf %151, %152 : vector<16x1xf32>
    %cst_39 = arith.constant 9.99999974E-6 : f32
    %154 = vector.broadcast %cst_39 : f32 to vector<16x1xf32>
    %155 = arith.addf %153, %154 : vector<16x1xf32>
    %156 = math.rsqrt %155 : vector<16x1xf32>
    %157 = vector.broadcast %156 : vector<16x1xf32> to vector<16x32xf32>
    %158 = arith.mulf %148, %157 : vector<16x32xf32>
    %159 = vector.broadcast %7 : vector<1x32xf32> to vector<16x32xf32>
    %160 = arith.mulf %158, %159 : vector<16x32xf32>
    %161 = vector.broadcast %8 : vector<1x32xf32> to vector<16x32xf32>
    %162 = arith.addf %160, %161 : vector<16x32xf32>
    %163 = arith.truncf %162 : vector<16x32xf32> to vector<16x32xbf16>
    %cst_40 = arith.constant dense<0.000000e+00> : vector<16x128xf32>
    %164 = tpu.matmul %163, %15, %cst_40 {dimension_numbers = #tpu.dot_dimension_numbers<[1], [0], [0], [1], [0, 0, 1, 1], [], []>} : vector<16x32xbf16>, vector<32x128xbf16>, vector<16x128xf32> -> vector<16x128xf32>
    %165 = vector.broadcast %11 : vector<1x128xf32> to vector<16x128xf32>
    %166 = arith.addf %164, %165 : vector<16x128xf32>
    %cst_41 = arith.constant 0.000000e+00 : f32
    %167 = vector.broadcast %cst_41 : f32 to vector<16x128xf32>
    %168 = arith.maximumf %166, %167 : vector<16x128xf32>
    %169 = arith.truncf %168 : vector<16x128xf32> to vector<16x128xbf16>
    %cst_42 = arith.constant dense<0.000000e+00> : vector<16x32xf32>
    %170 = tpu.matmul %169, %16, %cst_42 {dimension_numbers = #tpu.dot_dimension_numbers<[1], [0], [0], [1], [0, 0, 1, 1], [], []>} : vector<16x128xbf16>, vector<128x32xbf16>, vector<16x32xf32> -> vector<16x32xf32>
    %171 = vector.broadcast %12 : vector<1x32xf32> to vector<16x32xf32>
    %172 = arith.addf %170, %171 : vector<16x32xf32>
    %173 = arith.addf %0, %142 : vector<16x32xf32>
    %174 = arith.addf %173, %172 : vector<16x32xf32>
    %175 = vector.extract_strided_slice %1 {offsets = [10, 0], sizes = [1, 32], strides = [1, 1]} : vector<80x128xf32> to vector<1x32xf32>
    %176 = vector.extract_strided_slice %1 {offsets = [11, 0], sizes = [1, 32], strides = [1, 1]} : vector<80x128xf32> to vector<1x32xf32>
    %177 = vector.extract_strided_slice %1 {offsets = [12, 0], sizes = [1, 32], strides = [1, 1]} : vector<80x128xf32> to vector<1x32xf32>
    %178 = vector.extract_strided_slice %1 {offsets = [13, 0], sizes = [1, 32], strides = [1, 1]} : vector<80x128xf32> to vector<1x32xf32>
    %179 = vector.extract_strided_slice %1 {offsets = [14, 0], sizes = [1, 96], strides = [1, 1]} : vector<80x128xf32> to vector<1x96xf32>
    %180 = vector.extract_strided_slice %1 {offsets = [15, 0], sizes = [1, 32], strides = [1, 1]} : vector<80x128xf32> to vector<1x32xf32>
    %181 = vector.extract_strided_slice %1 {offsets = [16, 0], sizes = [1, 128], strides = [1, 1]} : vector<80x128xf32> to vector<1x128xf32>
    %182 = vector.extract_strided_slice %1 {offsets = [17, 0], sizes = [1, 32], strides = [1, 1]} : vector<80x128xf32> to vector<1x32xf32>
    %c224 = arith.constant 224 : index
    %c0_43 = arith.constant 0 : index
    %183 = vector.load %arg2[%c224, %c0_43] : memref<448x128xbf16, #tpu.memory_space<vmem>>, vector<32x96xbf16>
    %c256 = arith.constant 256 : index
    %c0_44 = arith.constant 0 : index
    %184 = vector.load %arg2[%c256, %c0_44] : memref<448x128xbf16, #tpu.memory_space<vmem>>, vector<32x128xbf16>
    %c288 = arith.constant 288 : index
    %c0_45 = arith.constant 0 : index
    %185 = vector.load %arg2[%c288, %c0_45] : memref<448x128xbf16, #tpu.memory_space<vmem>>, vector<32x128xbf16>
    %c320 = arith.constant 320 : index
    %c0_46 = arith.constant 0 : index
    %186 = vector.load %arg2[%c320, %c0_46] : memref<448x128xbf16, #tpu.memory_space<vmem>>, vector<128x32xbf16>
    %cst_47 = arith.constant dense<0.000000e+00> : vector<16xf32>
    %187 = vector.multi_reduction <add>, %174, %cst_47 [1] : vector<16x32xf32> to vector<16xf32>
    %188 = vector.shape_cast %187 : vector<16xf32> to vector<16x1xf32>
    %cst_48 = arith.constant 3.200000e+01 : f32
    %189 = vector.broadcast %cst_48 : f32 to vector<16x1xf32>
    %190 = arith.divf %188, %189 : vector<16x1xf32>
    %191 = vector.broadcast %190 : vector<16x1xf32> to vector<16x32xf32>
    %192 = arith.subf %174, %191 : vector<16x32xf32>
    %193 = arith.mulf %192, %192 : vector<16x32xf32>
    %cst_49 = arith.constant dense<0.000000e+00> : vector<16xf32>
    %194 = vector.multi_reduction <add>, %193, %cst_49 [1] : vector<16x32xf32> to vector<16xf32>
    %195 = vector.shape_cast %194 : vector<16xf32> to vector<16x1xf32>
    %cst_50 = arith.constant 3.200000e+01 : f32
    %196 = vector.broadcast %cst_50 : f32 to vector<16x1xf32>
    %197 = arith.divf %195, %196 : vector<16x1xf32>
    %cst_51 = arith.constant 9.99999974E-6 : f32
    %198 = vector.broadcast %cst_51 : f32 to vector<16x1xf32>
    %199 = arith.addf %197, %198 : vector<16x1xf32>
    %200 = math.rsqrt %199 : vector<16x1xf32>
    %201 = vector.broadcast %200 : vector<16x1xf32> to vector<16x32xf32>
    %202 = arith.mulf %192, %201 : vector<16x32xf32>
    %203 = vector.broadcast %2 : vector<1x32xf32> to vector<16x32xf32>
    %204 = arith.mulf %202, %203 : vector<16x32xf32>
    %205 = vector.broadcast %3 : vector<1x32xf32> to vector<16x32xf32>
    %206 = arith.addf %204, %205 : vector<16x32xf32>
    %cst_52 = arith.constant dense<0.000000e+00> : vector<16xf32>
    %207 = vector.multi_reduction <add>, %206, %cst_52 [1] : vector<16x32xf32> to vector<16xf32>
    %208 = vector.shape_cast %207 : vector<16xf32> to vector<16x1xf32>
    %cst_53 = arith.constant 3.200000e+01 : f32
    %209 = vector.broadcast %cst_53 : f32 to vector<16x1xf32>
    %210 = arith.divf %208, %209 : vector<16x1xf32>
    %211 = vector.broadcast %210 : vector<16x1xf32> to vector<16x32xf32>
    %212 = arith.subf %206, %211 : vector<16x32xf32>
    %213 = arith.mulf %212, %212 : vector<16x32xf32>
    %cst_54 = arith.constant dense<0.000000e+00> : vector<16xf32>
    %214 = vector.multi_reduction <add>, %213, %cst_54 [1] : vector<16x32xf32> to vector<16xf32>
    %215 = vector.shape_cast %214 : vector<16xf32> to vector<16x1xf32>
    %cst_55 = arith.constant 3.200000e+01 : f32
    %216 = vector.broadcast %cst_55 : f32 to vector<16x1xf32>
    %217 = arith.divf %215, %216 : vector<16x1xf32>
    %cst_56 = arith.constant 9.99999974E-6 : f32
    %218 = vector.broadcast %cst_56 : f32 to vector<16x1xf32>
    %219 = arith.addf %217, %218 : vector<16x1xf32>
    %220 = math.rsqrt %219 : vector<16x1xf32>
    %221 = vector.broadcast %220 : vector<16x1xf32> to vector<16x32xf32>
    %222 = arith.mulf %212, %221 : vector<16x32xf32>
    %223 = vector.broadcast %175 : vector<1x32xf32> to vector<16x32xf32>
    %224 = arith.mulf %222, %223 : vector<16x32xf32>
    %225 = vector.broadcast %176 : vector<1x32xf32> to vector<16x32xf32>
    %226 = arith.addf %224, %225 : vector<16x32xf32>
    %227 = arith.truncf %226 : vector<16x32xf32> to vector<16x32xbf16>
    %cst_57 = arith.constant dense<0.000000e+00> : vector<16x96xf32>
    %228 = tpu.matmul %227, %183, %cst_57 {dimension_numbers = #tpu.dot_dimension_numbers<[1], [0], [0], [1], [0, 0, 1, 1], [], []>} : vector<16x32xbf16>, vector<32x96xbf16>, vector<16x96xf32> -> vector<16x96xf32>
    %229 = vector.broadcast %179 : vector<1x96xf32> to vector<16x96xf32>
    %230 = arith.addf %228, %229 : vector<16x96xf32>
    %231 = vector.extract_strided_slice %230 {offsets = [0, 0], sizes = [16, 32], strides = [1, 1]} : vector<16x96xf32> to vector<16x32xf32>
    %232 = arith.truncf %231 : vector<16x32xf32> to vector<16x32xbf16>
    %233 = vector.extract_strided_slice %230 {offsets = [0, 32], sizes = [16, 32], strides = [1, 1]} : vector<16x96xf32> to vector<16x32xf32>
    %234 = arith.truncf %233 : vector<16x32xf32> to vector<16x32xbf16>
    %235 = vector.extract_strided_slice %230 {offsets = [0, 64], sizes = [16, 32], strides = [1, 1]} : vector<16x96xf32> to vector<16x32xf32>
    %236 = arith.truncf %235 : vector<16x32xf32> to vector<16x32xbf16>
    %cst_58 = arith.constant dense<0.000000e+00> : vector<16x128xf32>
    %237 = tpu.matmul %236, %184, %cst_58 {dimension_numbers = #tpu.dot_dimension_numbers<[1], [0], [0], [1], [0, 0, 1, 1], [], []>} : vector<16x32xbf16>, vector<32x128xbf16>, vector<16x128xf32> -> vector<16x128xf32>
    %238 = arith.truncf %237 : vector<16x128xf32> to vector<16x128xbf16>
    %239 = vector.extract_strided_slice %232 {offsets = [0, 0], sizes = [16, 8], strides = [1, 1]} : vector<16x32xbf16> to vector<16x8xbf16>
    %240 = vector.extract_strided_slice %234 {offsets = [0, 0], sizes = [16, 8], strides = [1, 1]} : vector<16x32xbf16> to vector<16x8xbf16>
    %cst_59 = arith.constant dense<0.000000e+00> : vector<16x16xf32>
    %241 = tpu.matmul %239, %240, %cst_59 {dimension_numbers = #tpu.dot_dimension_numbers<[1], [1], [0], [0], [0, 0, 1, 0], [], []>} : vector<16x8xbf16>, vector<16x8xbf16>, vector<16x16xf32> -> vector<16x16xf32>
    %242 = arith.addf %241, %4 : vector<16x16xf32>
    %cst_60 = arith.constant dense<0xFF800000> : vector<16xf32>
    %243 = vector.multi_reduction <maximumf>, %242, %cst_60 [1] : vector<16x16xf32> to vector<16xf32>
    %244 = vector.shape_cast %243 : vector<16xf32> to vector<16x1xf32>
    %245 = vector.broadcast %244 : vector<16x1xf32> to vector<16x16xf32>
    %246 = arith.subf %242, %245 : vector<16x16xf32>
    %247 = math.exp %246 : vector<16x16xf32>
    %cst_61 = arith.constant dense<0.000000e+00> : vector<16xf32>
    %248 = vector.multi_reduction <add>, %247, %cst_61 [1] : vector<16x16xf32> to vector<16xf32>
    %249 = vector.shape_cast %248 : vector<16xf32> to vector<16x1xf32>
    %250 = tpu.reciprocal %249 {approx = true} : vector<16x1xf32> -> vector<16x1xf32>
    %251 = vector.broadcast %250 : vector<16x1xf32> to vector<16x16xf32>
    %252 = arith.mulf %247, %251 : vector<16x16xf32>
    %253 = arith.truncf %252 : vector<16x16xf32> to vector<16x16xbf16>
    %254 = vector.extract_strided_slice %238 {offsets = [0, 0], sizes = [16, 32], strides = [1, 1]} : vector<16x128xbf16> to vector<16x32xbf16>
    %cst_62 = arith.constant dense<0.000000e+00> : vector<16x32xf32>
    %255 = tpu.matmul %253, %254, %cst_62 {dimension_numbers = #tpu.dot_dimension_numbers<[1], [0], [0], [1], [0, 0, 1, 1], [], []>} : vector<16x16xbf16>, vector<16x32xbf16>, vector<16x32xf32> -> vector<16x32xf32>
    %256 = vector.extract_strided_slice %232 {offsets = [0, 8], sizes = [16, 8], strides = [1, 1]} : vector<16x32xbf16> to vector<16x8xbf16>
    %257 = vector.extract_strided_slice %234 {offsets = [0, 8], sizes = [16, 8], strides = [1, 1]} : vector<16x32xbf16> to vector<16x8xbf16>
    %cst_63 = arith.constant dense<0.000000e+00> : vector<16x16xf32>
    %258 = tpu.matmul %256, %257, %cst_63 {dimension_numbers = #tpu.dot_dimension_numbers<[1], [1], [0], [0], [0, 0, 1, 0], [], []>} : vector<16x8xbf16>, vector<16x8xbf16>, vector<16x16xf32> -> vector<16x16xf32>
    %259 = arith.addf %258, %4 : vector<16x16xf32>
    %cst_64 = arith.constant dense<0xFF800000> : vector<16xf32>
    %260 = vector.multi_reduction <maximumf>, %259, %cst_64 [1] : vector<16x16xf32> to vector<16xf32>
    %261 = vector.shape_cast %260 : vector<16xf32> to vector<16x1xf32>
    %262 = vector.broadcast %261 : vector<16x1xf32> to vector<16x16xf32>
    %263 = arith.subf %259, %262 : vector<16x16xf32>
    %264 = math.exp %263 : vector<16x16xf32>
    %cst_65 = arith.constant dense<0.000000e+00> : vector<16xf32>
    %265 = vector.multi_reduction <add>, %264, %cst_65 [1] : vector<16x16xf32> to vector<16xf32>
    %266 = vector.shape_cast %265 : vector<16xf32> to vector<16x1xf32>
    %267 = tpu.reciprocal %266 {approx = true} : vector<16x1xf32> -> vector<16x1xf32>
    %268 = vector.broadcast %267 : vector<16x1xf32> to vector<16x16xf32>
    %269 = arith.mulf %264, %268 : vector<16x16xf32>
    %270 = arith.truncf %269 : vector<16x16xf32> to vector<16x16xbf16>
    %271 = vector.extract_strided_slice %238 {offsets = [0, 32], sizes = [16, 32], strides = [1, 1]} : vector<16x128xbf16> to vector<16x32xbf16>
    %cst_66 = arith.constant dense<0.000000e+00> : vector<16x32xf32>
    %272 = tpu.matmul %270, %271, %cst_66 {dimension_numbers = #tpu.dot_dimension_numbers<[1], [0], [0], [1], [0, 0, 1, 1], [], []>} : vector<16x16xbf16>, vector<16x32xbf16>, vector<16x32xf32> -> vector<16x32xf32>
    %273 = arith.addf %255, %272 : vector<16x32xf32>
    %274 = vector.extract_strided_slice %232 {offsets = [0, 16], sizes = [16, 8], strides = [1, 1]} : vector<16x32xbf16> to vector<16x8xbf16>
    %275 = vector.extract_strided_slice %234 {offsets = [0, 16], sizes = [16, 8], strides = [1, 1]} : vector<16x32xbf16> to vector<16x8xbf16>
    %cst_67 = arith.constant dense<0.000000e+00> : vector<16x16xf32>
    %276 = tpu.matmul %274, %275, %cst_67 {dimension_numbers = #tpu.dot_dimension_numbers<[1], [1], [0], [0], [0, 0, 1, 0], [], []>} : vector<16x8xbf16>, vector<16x8xbf16>, vector<16x16xf32> -> vector<16x16xf32>
    %277 = arith.addf %276, %4 : vector<16x16xf32>
    %cst_68 = arith.constant dense<0xFF800000> : vector<16xf32>
    %278 = vector.multi_reduction <maximumf>, %277, %cst_68 [1] : vector<16x16xf32> to vector<16xf32>
    %279 = vector.shape_cast %278 : vector<16xf32> to vector<16x1xf32>
    %280 = vector.broadcast %279 : vector<16x1xf32> to vector<16x16xf32>
    %281 = arith.subf %277, %280 : vector<16x16xf32>
    %282 = math.exp %281 : vector<16x16xf32>
    %cst_69 = arith.constant dense<0.000000e+00> : vector<16xf32>
    %283 = vector.multi_reduction <add>, %282, %cst_69 [1] : vector<16x16xf32> to vector<16xf32>
    %284 = vector.shape_cast %283 : vector<16xf32> to vector<16x1xf32>
    %285 = tpu.reciprocal %284 {approx = true} : vector<16x1xf32> -> vector<16x1xf32>
    %286 = vector.broadcast %285 : vector<16x1xf32> to vector<16x16xf32>
    %287 = arith.mulf %282, %286 : vector<16x16xf32>
    %288 = arith.truncf %287 : vector<16x16xf32> to vector<16x16xbf16>
    %289 = vector.extract_strided_slice %238 {offsets = [0, 64], sizes = [16, 32], strides = [1, 1]} : vector<16x128xbf16> to vector<16x32xbf16>
    %cst_70 = arith.constant dense<0.000000e+00> : vector<16x32xf32>
    %290 = tpu.matmul %288, %289, %cst_70 {dimension_numbers = #tpu.dot_dimension_numbers<[1], [0], [0], [1], [0, 0, 1, 1], [], []>} : vector<16x16xbf16>, vector<16x32xbf16>, vector<16x32xf32> -> vector<16x32xf32>
    %291 = arith.addf %273, %290 : vector<16x32xf32>
    %292 = vector.extract_strided_slice %232 {offsets = [0, 24], sizes = [16, 8], strides = [1, 1]} : vector<16x32xbf16> to vector<16x8xbf16>
    %293 = vector.extract_strided_slice %234 {offsets = [0, 24], sizes = [16, 8], strides = [1, 1]} : vector<16x32xbf16> to vector<16x8xbf16>
    %cst_71 = arith.constant dense<0.000000e+00> : vector<16x16xf32>
    %294 = tpu.matmul %292, %293, %cst_71 {dimension_numbers = #tpu.dot_dimension_numbers<[1], [1], [0], [0], [0, 0, 1, 0], [], []>} : vector<16x8xbf16>, vector<16x8xbf16>, vector<16x16xf32> -> vector<16x16xf32>
    %295 = arith.addf %294, %4 : vector<16x16xf32>
    %cst_72 = arith.constant dense<0xFF800000> : vector<16xf32>
    %296 = vector.multi_reduction <maximumf>, %295, %cst_72 [1] : vector<16x16xf32> to vector<16xf32>
    %297 = vector.shape_cast %296 : vector<16xf32> to vector<16x1xf32>
    %298 = vector.broadcast %297 : vector<16x1xf32> to vector<16x16xf32>
    %299 = arith.subf %295, %298 : vector<16x16xf32>
    %300 = math.exp %299 : vector<16x16xf32>
    %cst_73 = arith.constant dense<0.000000e+00> : vector<16xf32>
    %301 = vector.multi_reduction <add>, %300, %cst_73 [1] : vector<16x16xf32> to vector<16xf32>
    %302 = vector.shape_cast %301 : vector<16xf32> to vector<16x1xf32>
    %303 = tpu.reciprocal %302 {approx = true} : vector<16x1xf32> -> vector<16x1xf32>
    %304 = vector.broadcast %303 : vector<16x1xf32> to vector<16x16xf32>
    %305 = arith.mulf %300, %304 : vector<16x16xf32>
    %306 = arith.truncf %305 : vector<16x16xf32> to vector<16x16xbf16>
    %307 = vector.extract_strided_slice %238 {offsets = [0, 96], sizes = [16, 32], strides = [1, 1]} : vector<16x128xbf16> to vector<16x32xbf16>
    %cst_74 = arith.constant dense<0.000000e+00> : vector<16x32xf32>
    %308 = tpu.matmul %306, %307, %cst_74 {dimension_numbers = #tpu.dot_dimension_numbers<[1], [0], [0], [1], [0, 0, 1, 1], [], []>} : vector<16x16xbf16>, vector<16x32xbf16>, vector<16x32xf32> -> vector<16x32xf32>
    %309 = arith.addf %291, %308 : vector<16x32xf32>
    %310 = arith.addf %206, %309 : vector<16x32xf32>
    %311 = vector.broadcast %180 : vector<1x32xf32> to vector<16x32xf32>
    %312 = arith.addf %310, %311 : vector<16x32xf32>
    %cst_75 = arith.constant dense<0.000000e+00> : vector<16xf32>
    %313 = vector.multi_reduction <add>, %312, %cst_75 [1] : vector<16x32xf32> to vector<16xf32>
    %314 = vector.shape_cast %313 : vector<16xf32> to vector<16x1xf32>
    %cst_76 = arith.constant 3.200000e+01 : f32
    %315 = vector.broadcast %cst_76 : f32 to vector<16x1xf32>
    %316 = arith.divf %314, %315 : vector<16x1xf32>
    %317 = vector.broadcast %316 : vector<16x1xf32> to vector<16x32xf32>
    %318 = arith.subf %312, %317 : vector<16x32xf32>
    %319 = arith.mulf %318, %318 : vector<16x32xf32>
    %cst_77 = arith.constant dense<0.000000e+00> : vector<16xf32>
    %320 = vector.multi_reduction <add>, %319, %cst_77 [1] : vector<16x32xf32> to vector<16xf32>
    %321 = vector.shape_cast %320 : vector<16xf32> to vector<16x1xf32>
    %cst_78 = arith.constant 3.200000e+01 : f32
    %322 = vector.broadcast %cst_78 : f32 to vector<16x1xf32>
    %323 = arith.divf %321, %322 : vector<16x1xf32>
    %cst_79 = arith.constant 9.99999974E-6 : f32
    %324 = vector.broadcast %cst_79 : f32 to vector<16x1xf32>
    %325 = arith.addf %323, %324 : vector<16x1xf32>
    %326 = math.rsqrt %325 : vector<16x1xf32>
    %327 = vector.broadcast %326 : vector<16x1xf32> to vector<16x32xf32>
    %328 = arith.mulf %318, %327 : vector<16x32xf32>
    %329 = vector.broadcast %177 : vector<1x32xf32> to vector<16x32xf32>
    %330 = arith.mulf %328, %329 : vector<16x32xf32>
    %331 = vector.broadcast %178 : vector<1x32xf32> to vector<16x32xf32>
    %332 = arith.addf %330, %331 : vector<16x32xf32>
    %333 = arith.truncf %332 : vector<16x32xf32> to vector<16x32xbf16>
    %cst_80 = arith.constant dense<0.000000e+00> : vector<16x128xf32>
    %334 = tpu.matmul %333, %185, %cst_80 {dimension_numbers = #tpu.dot_dimension_numbers<[1], [0], [0], [1], [0, 0, 1, 1], [], []>} : vector<16x32xbf16>, vector<32x128xbf16>, vector<16x128xf32> -> vector<16x128xf32>
    %335 = vector.broadcast %181 : vector<1x128xf32> to vector<16x128xf32>
    %336 = arith.addf %334, %335 : vector<16x128xf32>
    %cst_81 = arith.constant 0.000000e+00 : f32
    %337 = vector.broadcast %cst_81 : f32 to vector<16x128xf32>
    %338 = arith.maximumf %336, %337 : vector<16x128xf32>
    %339 = arith.truncf %338 : vector<16x128xf32> to vector<16x128xbf16>
    %cst_82 = arith.constant dense<0.000000e+00> : vector<16x32xf32>
    %340 = tpu.matmul %339, %186, %cst_82 {dimension_numbers = #tpu.dot_dimension_numbers<[1], [0], [0], [1], [0, 0, 1, 1], [], []>} : vector<16x128xbf16>, vector<128x32xbf16>, vector<16x32xf32> -> vector<16x32xf32>
    %341 = vector.broadcast %182 : vector<1x32xf32> to vector<16x32xf32>
    %342 = arith.addf %340, %341 : vector<16x32xf32>
    %343 = arith.addf %174, %312 : vector<16x32xf32>
    %344 = arith.addf %343, %342 : vector<16x32xf32>
    %345 = vector.extract_strided_slice %1 {offsets = [56, 0], sizes = [2, 16], strides = [1, 1]} : vector<80x128xf32> to vector<2x16xf32>
    %346 = vector.extract_strided_slice %1 {offsets = [24, 0], sizes = [32, 6], strides = [1, 1]} : vector<80x128xf32> to vector<32x6xf32>
    %347 = vector.extract_strided_slice %1 {offsets = [18, 0], sizes = [1, 6], strides = [1, 1]} : vector<80x128xf32> to vector<1x6xf32>
    %cst_83 = arith.constant dense<0.000000e+00> : vector<2x32xf32>
    %348 = tpu.matmul %345, %344, %cst_83 {dimension_numbers = #tpu.dot_dimension_numbers<[1], [0], [0], [1], [0, 0, 1, 1], [], []>} : vector<2x16xf32>, vector<16x32xf32>, vector<2x32xf32> -> vector<2x32xf32>
    %cst_84 = arith.constant dense<0.000000e+00> : vector<2x6xf32>
    %349 = tpu.matmul %348, %346, %cst_84 {dimension_numbers = #tpu.dot_dimension_numbers<[1], [0], [0], [1], [0, 0, 1, 1], [], []>} : vector<2x32xf32>, vector<32x6xf32>, vector<2x6xf32> -> vector<2x6xf32>
    %350 = vector.broadcast %347 : vector<1x6xf32> to vector<2x6xf32>
    %351 = arith.addf %349, %350 : vector<2x6xf32>
    %cst_85 = arith.constant 0.000000e+00 : f32
    %352 = vector.broadcast %cst_85 : f32 to vector<16x96xf32>
    %353 = tpu.concatenate %344, %352 in 1 : vector<16x32xf32>, vector<16x96xf32> -> vector<16x128xf32>
    %cst_86 = arith.constant 0.000000e+00 : f32
    %354 = vector.broadcast %cst_86 : f32 to vector<2x90xf32>
    %355 = tpu.concatenate %348, %351, %354 in 1 : vector<2x32xf32>, vector<2x6xf32>, vector<2x90xf32> -> vector<2x128xf32>
    %cst_87 = arith.constant 0.000000e+00 : f32
    %356 = vector.broadcast %cst_87 : f32 to vector<6x128xf32>
    %357 = tpu.concatenate %353, %355, %356 in 0 : vector<16x128xf32>, vector<2x128xf32>, vector<6x128xf32> -> vector<24x128xf32>
    %c0_88 = arith.constant 0 : index
    %c0_89 = arith.constant 0 : index
    %358 = vector.load %arg3[%c0_88, %c0_89] : memref<24x128xf32, #tpu.memory_space<vmem>>, vector<24x128xf32>
    tpu.vector_store %arg3[%c0_88, %c0_89], %357 {strides = array<i32>} : memref<24x128xf32, #tpu.memory_space<vmem>>, vector<24x128xf32>,
    return
  }
}

</mosaic_0001>

<llo_original>
// kernel: model_forward.1
$region0: #{model_forward.1}
  #allocation0 [shape = 'u32[]', space=smem, size = 0x4, offset = 0x4, fixed_abs, tag = 'smem constant byte address 0x4 - core index']
  #allocation1 [shape = 'u32[144,128]{1,0:T(1,128)}', space=vmem, size = 0x12000, scoped, tag = 'internal scratch']
  %s0 = inlined_call_operand.hbm [shape: f32[16,32], index: 0, kind: input, shape index: {}]
  %s1 = inlined_call_operand.hbm [shape: f32[80,128], index: 1, kind: input, shape index: {}]
  %s2 = inlined_call_operand.hbm [shape: bf16[448,128], index: 2, kind: input, shape index: {}]
  %s3 = inlined_call_operand.vmem [shape: f32[24,128], index: 3, kind: output, shape index: {}]
  %s4 = sld [smem:[#allocation0]]
  $region34: #{model_forward.1} parent=0
    _
  %s6 = ssub.s32 1, %s4
  %s7 = scalar_select 0, %s6, %s4
  $region1: #{model_forward.1} parent=0
    #allocation2 [shape = 'u8[8192]{0}', space=vmem, size = 0x2000, scoped, tag = 'input window, operand 0, single buffered']
    #allocation3 [shape = 's32[1]{0}', space=sflag, size = 0x4, scoped, tag = 'scoped memory for model_forward.1']
    #allocation4 [shape = 'u8[40960]{0}', space=vmem, size = 0xa000, scoped, tag = 'input window, operand 1, single buffered']
    #allocation5 [shape = 's32[1]{0}', space=sflag, size = 0x4, scoped, tag = 'scoped memory for model_forward.1']
    #allocation6 [shape = 'u8[114688]{0}', space=vmem, size = 0x1c000, scoped, tag = 'input window, operand 2, single buffered']
    %8 = vsyncpa [#allocation3], 0
    %9 = vsyncpa [#allocation5], 0
    // Predicated region
    $region2: #{model_forward.1} parent=1 // pred_check
      _
    $region3: #{model_forward.1} parent=1 // pred_check_branch
      %11 = sbr.rel (0) target = $region5
    $region4: #{model_forward.1} parent=1 // pred_region
      %s13 = ssub.s32 256, 256
      %14 = vsyncadd [#allocation3], %s13
      %s15 = sshll.u32 [#allocation2], 4
      %s16 = int_to_ptr.vmem [resolvable:$true] %s15
      %21 = dma.hbm_to_vmem [thread:$0]  %s0, 256, %s16, [#allocation3], 128, 128, 8
    $region5: #{model_forward.1} parent=1 // pred_fallthru
      _
    // Predicated region
    $region6: #{model_forward.1} parent=1 // pred_check
      _
    $region7: #{model_forward.1} parent=1 // pred_check_branch
      %23 = sbr.rel (0) target = $region9
    $region8: #{model_forward.1} parent=1 // pred_region
      %s25 = ssub.s32 1280, 1280
      %26 = vsyncadd [#allocation5], %s25
      %s27 = sshll.u32 [#allocation4], 4
      %s28 = int_to_ptr.vmem [resolvable:$true] %s27
      %33 = dma.hbm_to_vmem [thread:$0]  %s1, 1280, %s28, [#allocation5], 128, 128, 8
    $region9: #{model_forward.1} parent=1 // pred_fallthru
      _
    // Predicated region
    $region10: #{model_forward.1} parent=1 // pred_check
      _
    $region11: #{model_forward.1} parent=1 // pred_check_branch
      %35 = sbr.rel (0) target = $region13
    $region12: #{model_forward.1} parent=1 // pred_region
      %s37 = ssub.s32 3584, 3584
      %38 = vsyncadd [#allocation5], %s37
      %s39 = sshll.u32 [#allocation6], 4
      %s40 = int_to_ptr.vmem [resolvable:$true] %s39
      %45 = dma.hbm_to_vmem [thread:$0]  %s2, 3584, %s40, [#allocation5], 64, 64, 4
    $region13: #{model_forward.1} parent=1 // pred_fallthru
      _
    // Predicated region
    $region14: #{model_forward.1} parent=1 // pred_check
      _
    $region15: #{model_forward.1} parent=1 // pred_check_branch
      %47 = sbr.rel (0) target = $region17
    $region16: #{model_forward.1} parent=1 // pred_region
      %48 = dma.done [#allocation3], 256
    $region17: #{model_forward.1} parent=1 // pred_fallthru
      _
    // Predicated region
    $region18: #{model_forward.1} parent=1 // pred_check
      _
    $region19: #{model_forward.1} parent=1 // pred_check_branch
      %50 = sbr.rel (0) target = $region21
    $region20: #{model_forward.1} parent=1 // pred_region
      %51 = dma.done [#allocation5], 1280
    $region21: #{model_forward.1} parent=1 // pred_fallthru
      _
    // Predicated region
    $region22: #{model_forward.1} parent=1 // pred_check
      _
    $region23: #{model_forward.1} parent=1 // pred_check_branch
      %53 = sbr.rel (0) target = $region25
    $region24: #{model_forward.1} parent=1 // pred_region
      %54 = dma.done [#allocation5], 3584
    $region25: #{model_forward.1} parent=1 // pred_fallthru
      _
    %v56 = vld [vmem:[#allocation2] sm:$0xff]
    %v57 = vld [vmem:[#allocation2 + $0x8] sm:$0xff]
    %v58 = vld [vmem:[#allocation4] sm:$0xff]
    %v59 = vld [vmem:[#allocation4 + $0x8] sm:$0xff]
    %v60 = vld [vmem:[#allocation4 + $0x10] sm:$0xff]
    %v61 = vld [vmem:[#allocation4 + $0x18] sm:$0xff]
    %v62 = vld [vmem:[#allocation4 + $0x20] sm:$0xff]
    %v63 = vld [vmem:[#allocation4 + $0x28] sm:$0xff]
    %v64 = vld [vmem:[#allocation4 + $0x30] sm:$0xff]
    %v65 = vld [vmem:[#allocation4 + $0x38] sm:$0xff]
    %v66 = vld [vmem:[#allocation4 + $0x40] sm:$0xff]
    %v67 = vld [vmem:[#allocation4 + $0x48] sm:$0xff]
    %v68 = vld [vmem:[#allocation6] sm:$0xf]
    %v69 = vld [vmem:[#allocation6 + $0x4] sm:$0xf]
    %v70 = vld [vmem:[#allocation6 + $0x8] sm:$0xf]
    %v71 = vld [vmem:[#allocation6 + $0xc] sm:$0xf]
    %v72 = vld [vmem:[#allocation6 + $0x10] sm:$0xf]
    %v73 = vld [vmem:[#allocation6 + $0x14] sm:$0xf]
    %v74 = vld [vmem:[#allocation6 + $0x18] sm:$0xf]
    %v75 = vld [vmem:[#allocation6 + $0x1c] sm:$0xf]
    %v76 = vld [vmem:[#allocation6 + $0x20] sm:$0xf]
    %v77 = vld [vmem:[#allocation6 + $0x24] sm:$0xf]
    %v78 = vld [vmem:[#allocation6 + $0x28] sm:$0xf]
    %v79 = vld [vmem:[#allocation6 + $0x2c] sm:$0xf]
    %v80 = vld [vmem:[#allocation6 + $0x30] sm:$0xf]
    %v81 = vld [vmem:[#allocation6 + $0x34] sm:$0xf]
    %v82 = vld [vmem:[#allocation6 + $0x38] sm:$0xf]
    %v83 = vld [vmem:[#allocation6 + $0x3c] sm:$0xf]
    %v84 = vld [vmem:[#allocation6 + $0x40] sm:$0xf]
    %v85 = vld [vmem:[#allocation6 + $0x44] sm:$0xf]
    %v86 = vld [vmem:[#allocation6 + $0x48] sm:$0xf]
    %v87 = vld [vmem:[#allocation6 + $0x4c] sm:$0xf]
    %v88 = vld [vmem:[#allocation6 + $0x50] sm:$0xf]
    %v89 = vld [vmem:[#allocation6 + $0x54] sm:$0xf]
    %v90 = vld [vmem:[#allocation6 + $0x58] sm:$0xf]
    %v91 = vld [vmem:[#allocation6 + $0x5c] sm:$0xf]
    %v92 = vld [vmem:[#allocation6 + $0x60] sm:$0xf]
    %v93 = vld [vmem:[#allocation6 + $0x64] sm:$0xf]
    %v94 = vld [vmem:[#allocation6 + $0x68] sm:$0xf]
    %v95 = vld [vmem:[#allocation6 + $0x6c] sm:$0xf]
    %vm96 = vcmask 261120
    %v97 = vsel %vm96, %v56, 0.0
    %98 = vadd.xlane.f32.xlu0 %v97
    %v99 = vpop.xlane.xlu0 %98
    %v100 = vsel %vm96, %v57, 0.0
    %101 = vadd.xlane.f32.xlu0 %v100
    %v102 = vpop.xlane.xlu0 %101
    %v103 = vrcp.pop 32.0
    %v104 = vmul.f32 %v99, %v103
    %v105 = vmul.f32 %v102, %v103
    %v106 = vsub.f32 %v56, %v104
    %v107 = vsub.f32 %v57, %v105
    %v108 = vmul.f32 %v106, %v106
    %v109 = vmul.f32 %v107, %v107
    %v110 = vsel %vm96, %v108, 0.0
    %111 = vadd.xlane.f32.xlu0 %v110
    %v112 = vpop.xlane.xlu0 %111
    %v113 = vsel %vm96, %v109, 0.0
    %114 = vadd.xlane.f32.xlu0 %v113
    %v115 = vpop.xlane.xlu0 %114
    %v116 = vmul.f32 %v112, %v103
    %v117 = vmul.f32 %v115, %v103
    %v118 = vadd.f32 %v116, 1e-05
    %v119 = vadd.f32 %v117, 1e-05
    %v120 = vrsqrt.pop %v118
    %v121 = vrsqrt.pop %v119
    %v122 = vmul.f32 %v106, %v120
    %v123 = vmul.f32 %v107, %v121
    %v124 = vlaneseq
    %v125 = vshrl.u32 %v124, 7
    %v126 = vsub.s32 0, %v125
    %v127 = vrot.slane %v58, %v126
    %v128 = vmul.f32 %v122, %v127
    %v129 = vmul.f32 %v123, %v127
    %v130 = vlaneseq
    %v131 = vshrl.u32 %v130, 7
    %v132 = vsub.s32 1, %v131
    %v133 = vrot.slane %v58, %v132
    %v134 = vadd.f32 %v128, %v133
    %v135 = vadd.f32 %v129, %v133
    %v136 = vsel %vm96, %v134, 0.0
    %137 = vadd.xlane.f32.xlu0 %v136
    %v138 = vpop.xlane.xlu0 %137
    %v139 = vsel %vm96, %v135, 0.0
    %140 = vadd.xlane.f32.xlu0 %v139
    %v141 = vpop.xlane.xlu0 %140
    %v142 = vmul.f32 %v138, %v103
    %v143 = vmul.f32 %v141, %v103
    %v144 = vsub.f32 %v134, %v142
    %v145 = vsub.f32 %v135, %v143
    %v146 = vmul.f32 %v144, %v144
    %v147 = vmul.f32 %v145, %v145
    %v148 = vsel %vm96, %v146, 0.0
    %149 = vadd.xlane.f32.xlu0 %v148
    %v150 = vpop.xlane.xlu0 %149
    %v151 = vsel %vm96, %v147, 0.0
    %152 = vadd.xlane.f32.xlu0 %v151
    %v153 = vpop.xlane.xlu0 %152
    %v154 = vmul.f32 %v150, %v103
    %v155 = vmul.f32 %v153, %v103
    %v156 = vadd.f32 %v154, 1e-05
    %v157 = vadd.f32 %v155, 1e-05
    %v158 = vrsqrt.pop %v156
    %v159 = vrsqrt.pop %v157
    %v160 = vmul.f32 %v144, %v158
    %v161 = vmul.f32 %v145, %v159
    %v162 = vlaneseq
    %v163 = vshrl.u32 %v162, 7
    %v164 = vsub.s32 2, %v163
    %v165 = vrot.slane %v58, %v164
    %v166 = vmul.f32 %v160, %v165
    %v167 = vmul.f32 %v161, %v165
    %v168 = vlaneseq
    %v169 = vshrl.u32 %v168, 7
    %v170 = vsub.s32 3, %v169
    %v171 = vrot.slane %v58, %v170
    %v172 = vadd.f32 %v166, %v171
    %v173 = vadd.f32 %v167, %v171
    %v174 = vpack.c.bf16 %v173, %v172
    %v175 = vlaneseq
    %v176 = vshrl.u32 %v175, 7
    %v177 = vsub.s32 6, %v176
    %v178 = vrot.slane %v58, %v177
    %v183 = vunpack.c.l.b16 %v68
    %v184 = vunpack.c.l.b16 %v69
    %v185 = vunpack.c.l.b16 %v70
    %v186 = vunpack.c.l.b16 %v71
    %v187 = vpack.c.b16 %v184, %v183
    %v188 = vpack.c.b16 %v186, %v185
    %v192 = vsel %vm96, %v174, 0
    %194 = vmatprep.subr.bf16.mxu0 0
    %195 = vmatpush1.bf16.msra.mxu0 %v187
    %196 = vmatprep.subr.bf16.mxu0 0
    %197 = vmatpush1.bf16.msra.mxu0 %v188
    %198 = vmatprep.subr.bf16.mxu0 0
    %199 = vmatpush1.bf16.msra.mxu0 0
    %200 = vmatprep.subr.bf16.mxu0 0
    %201 = vmatpush1.bf16.msra.mxu0 0
    %202 = vmatprep.subr.bf16.mxu0 0
    %203 = vmatpush1.bf16.msra.mxu0 0
    %204 = vmatprep.subr.bf16.mxu0 0
    %205 = vmatpush1.bf16.msra.mxu0 0
    %206 = vmatprep.subr.bf16.mxu0 0
    %207 = vmatpush1.bf16.msra.mxu0 0
    %208 = vmatprep.subr.bf16.mxu0 0
    %209 = vmatpush1.bf16.msra.mxu0 0
    %210 = vmatprep.subr.bf16.mxu0 0
    %211 = vmatpush1.bf16.msra.mxu0 0
    %212 = vmatprep.subr.bf16.mxu0 0
    %213 = vmatpush1.bf16.msra.mxu0 0
    %214 = vmatprep.subr.bf16.mxu0 0
    %215 = vmatpush1.bf16.msra.mxu0 0
    %216 = vmatprep.subr.bf16.mxu0 0
    %217 = vmatpush1.bf16.msra.mxu0 0
    %218 = vmatprep.subr.bf16.mxu0 0
    %219 = vmatpush1.bf16.msra.mxu0 0
    %220 = vmatprep.subr.bf16.mxu0 0
    %221 = vmatpush1.bf16.msra.mxu0 0
    %222 = vmatprep.subr.bf16.mxu0 0
    %223 = vmatpush1.bf16.msra.mxu0 0
    %224 = vmatprep.subr.bf16.mxu0 0
    %225 = vmatpush1.bf16.msra.mxu0 0
    %226 = vmatprep.mubr.bf16.mxu0 0
    %227 = vmatmul.mubr.bf16.gmra.mrb[0].mxu0 %v192
    %v228 = vpop.f32.mrb[0].mxu0
    %v229 = vadd.f32 %v178, %v228
    %v230 = vpop.f32.mrb[0].mxu0
    %v231 = vpop.f32.mrb[0].mxu0
    %v232 = vadd.f32 %v178, %v231
    %v233 = vpop.f32.mrb[0].mxu0
    %234 = vdwg.mxu0
    %v235 = vpack.c.bf16 %v232, %v229
    %237 = vrot.lane.b32.xlu0 %v235, 64
    %v238 = vpop.permute.xlu0 %237
    %v243 = vunpack.c.l.b16 %v72
    %v244 = vunpack.c.l.b16 %v73
    %v245 = vunpack.c.l.b16 %v74
    %v246 = vunpack.c.l.b16 %v75
    %v247 = vpack.c.b16 %v244, %v243
    %v248 = vpack.c.b16 %v246, %v245
    %v252 = vsel %vm96, %v238, 0
    %254 = vmatprep.subr.bf16.mxu0 0
    %255 = vmatpush1.bf16.msra.mxu0 %v247
    %256 = vmatprep.subr.bf16.mxu0 0
    %257 = vmatpush1.bf16.msra.mxu0 %v248
    %258 = vmatprep.subr.bf16.mxu0 0
    %259 = vmatpush1.bf16.msra.mxu0 0
    %260 = vmatprep.subr.bf16.mxu0 0
    %261 = vmatpush1.bf16.msra.mxu0 0
    %262 = vmatprep.subr.bf16.mxu0 0
    %263 = vmatpush1.bf16.msra.mxu0 0
    %264 = vmatprep.subr.bf16.mxu0 0
    %265 = vmatpush1.bf16.msra.mxu0 0
    %266 = vmatprep.subr.bf16.mxu0 0
    %267 = vmatpush1.bf16.msra.mxu0 0
    %268 = vmatprep.subr.bf16.mxu0 0
    %269 = vmatpush1.bf16.msra.mxu0 0
    %270 = vmatprep.subr.bf16.mxu0 0
    %271 = vmatpush1.bf16.msra.mxu0 0
    %272 = vmatprep.subr.bf16.mxu0 0
    %273 = vmatpush1.bf16.msra.mxu0 0
    %274 = vmatprep.subr.bf16.mxu0 0
    %275 = vmatpush1.bf16.msra.mxu0 0
    %276 = vmatprep.subr.bf16.mxu0 0
    %277 = vmatpush1.bf16.msra.mxu0 0
    %278 = vmatprep.subr.bf16.mxu0 0
    %279 = vmatpush1.bf16.msra.mxu0 0
    %280 = vmatprep.subr.bf16.mxu0 0
    %281 = vmatpush1.bf16.msra.mxu0 0
    %282 = vmatprep.subr.bf16.mxu0 0
    %283 = vmatpush1.bf16.msra.mxu0 0
    %284 = vmatprep.subr.bf16.mxu0 0
    %285 = vmatpush1.bf16.msra.mxu0 0
    %286 = vmatprep.mubr.bf16.mxu0 0
    %287 = vmatmul.mubr.bf16.gmra.mrb[0].mxu0 %v252
    %v288 = vpop.f32.mrb[0].mxu0
    %v289 = vadd.f32 0.0, %v288
    %v290 = vpop.f32.mrb[0].mxu0
    %v291 = vpop.f32.mrb[0].mxu0
    %v292 = vadd.f32 0.0, %v291
    %v293 = vpop.f32.mrb[0].mxu0
    %294 = vdwg.mxu0
    %v295 = vpack.c.bf16 %v292, %v289
    %296 = vrot.lane.b32.xlu0 %v235, 96
    %v297 = vpop.permute.xlu0 %296
    %vm298 = vcmask 64512
    %v300 = vsel %vm298, %v235, 0
    %v303 = vsel %vm298, %v297, 0
    %305 = vmatprep.subr.bf16.mxu0 0
    %306 = vmatpush1.bf16.xpose.msra.mxu0 %v303
    %307 = vmatprep.subr.bf16.mxu0 0
    %308 = vmatpush1.bf16.xpose.msra.mxu0 0
    %309 = vmatprep.subr.bf16.mxu0 0
    %310 = vmatpush1.bf16.xpose.msra.mxu0 0
    %311 = vmatprep.subr.bf16.mxu0 0
    %312 = vmatpush1.bf16.xpose.msra.mxu0 0
    %313 = vmatprep.subr.bf16.mxu0 0
    %314 = vmatpush1.bf16.xpose.msra.mxu0 0
    %315 = vmatprep.subr.bf16.mxu0 0
    %316 = vmatpush1.bf16.xpose.msra.mxu0 0
    %317 = vmatprep.subr.bf16.mxu0 0
    %318 = vmatpush1.bf16.xpose.msra.mxu0 0
    %319 = vmatprep.subr.bf16.mxu0 0
    %320 = vmatpush1.bf16.xpose.msra.mxu0 0
    %321 = vmatprep.subr.bf16.mxu0 0
    %322 = vmatpush1.bf16.xpose.msra.mxu0 0
    %323 = vmatprep.subr.bf16.mxu0 0
    %324 = vmatpush1.bf16.xpose.msra.mxu0 0
    %325 = vmatprep.subr.bf16.mxu0 0
    %326 = vmatpush1.bf16.xpose.msra.mxu0 0
    %327 = vmatprep.subr.bf16.mxu0 0
    %328 = vmatpush1.bf16.xpose.msra.mxu0 0
    %329 = vmatprep.subr.bf16.mxu0 0
    %330 = vmatpush1.bf16.xpose.msra.mxu0 0
    %331 = vmatprep.subr.bf16.mxu0 0
    %332 = vmatpush1.bf16.xpose.msra.mxu0 0
    %333 = vmatprep.subr.bf16.mxu0 0
    %334 = vmatpush1.bf16.xpose.msra.mxu0 0
    %335 = vmatprep.subr.bf16.mxu0 0
    %336 = vmatpush1.bf16.xpose.msra.mxu0 0
    %337 = vmatprep.mubr.bf16.mxu0 0
    %338 = vmatmul.mubr.bf16.gmra.mrb[0].mxu0 %v300
    %v339 = vpop.f32.mrb[0].mxu0
    %v340 = vadd.f32 %v66, %v339
    %v341 = vpop.f32.mrb[0].mxu0
    %v342 = vpop.f32.mrb[0].mxu0
    %v343 = vadd.f32 %v67, %v342
    %v344 = vpop.f32.mrb[0].mxu0
    %345 = vdwg.mxu0
    %vm346 = vcmask 130048
    %v347 = vsel %vm346, %v340, -inf
    %348 = vmax.xlane.f32.xlu0 %v347
    %v349 = vpop.xlane.xlu0 %348
    %v350 = vsel %vm346, %v343, -inf
    %351 = vmax.xlane.f32.xlu0 %v350
    %v352 = vpop.xlane.xlu0 %351
    %v353 = vsub.f32 %v340, %v349
    %v354 = vsub.f32 %v343, %v352
    %v355 = vmul.f32 %v353, 1.442695
    %v356 = vpow.pop %v355
    %v357 = vmul.f32 %v354, 1.442695
    %v358 = vpow.pop %v357
    %v359 = vsel %vm346, %v356, 0.0
    %360 = vadd.xlane.f32.xlu0 %v359
    %v361 = vpop.xlane.xlu0 %360
    %v362 = vsel %vm346, %v358, 0.0
    %363 = vadd.xlane.f32.xlu0 %v362
    %v364 = vpop.xlane.xlu0 %363
    %v365 = vrcp.pop %v361
    %v366 = vrcp.pop %v364
    %v367 = vmul.f32 %v356, %v365
    %v368 = vmul.f32 %v358, %v366
    %v369 = vpack.c.bf16 %v368, %v367
    %370 = vrot.lane.b32.xlu0 %v235, 120
    %v371 = vpop.permute.xlu0 %370
    %372 = vrot.lane.b32.xlu0 %v235, 88
    %v373 = vpop.permute.xlu0 %372
    %v375 = vsel %vm298, %v371, 0
    %v378 = vsel %vm298, %v373, 0
    %380 = vmatprep.subr.bf16.mxu0 0
    %381 = vmatpush1.bf16.xpose.msra.mxu0 %v378
    %382 = vmatprep.subr.bf16.mxu0 0
    %383 = vmatpush1.bf16.xpose.msra.mxu0 0
    %384 = vmatprep.subr.bf16.mxu0 0
    %385 = vmatpush1.bf16.xpose.msra.mxu0 0
    %386 = vmatprep.subr.bf16.mxu0 0
    %387 = vmatpush1.bf16.xpose.msra.mxu0 0
    %388 = vmatprep.subr.bf16.mxu0 0
    %389 = vmatpush1.bf16.xpose.msra.mxu0 0
    %390 = vmatprep.subr.bf16.mxu0 0
    %391 = vmatpush1.bf16.xpose.msra.mxu0 0
    %392 = vmatprep.subr.bf16.mxu0 0
    %393 = vmatpush1.bf16.xpose.msra.mxu0 0
    %394 = vmatprep.subr.bf16.mxu0 0
    %395 = vmatpush1.bf16.xpose.msra.mxu0 0
    %396 = vmatprep.subr.bf16.mxu0 0
    %397 = vmatpush1.bf16.xpose.msra.mxu0 0
    %398 = vmatprep.subr.bf16.mxu0 0
    %399 = vmatpush1.bf16.xpose.msra.mxu0 0
    %400 = vmatprep.subr.bf16.mxu0 0
    %401 = vmatpush1.bf16.xpose.msra.mxu0 0
    %402 = vmatprep.subr.bf16.mxu0 0
    %403 = vmatpush1.bf16.xpose.msra.mxu0 0
    %404 = vmatprep.subr.bf16.mxu0 0
    %405 = vmatpush1.bf16.xpose.msra.mxu0 0
    %406 = vmatprep.subr.bf16.mxu0 0
    %407 = vmatpush1.bf16.xpose.msra.mxu0 0
    %408 = vmatprep.subr.bf16.mxu0 0
    %409 = vmatpush1.bf16.xpose.msra.mxu0 0
    %410 = vmatprep.subr.bf16.mxu0 0
    %411 = vmatpush1.bf16.xpose.msra.mxu0 0
    %412 = vmatprep.mubr.bf16.mxu0 0
    %413 = vmatmul.mubr.bf16.gmra.mrb[0].mxu0 %v375
    %v414 = vpop.f32.mrb[0].mxu0
    %v415 = vadd.f32 %v66, %v414
    %v416 = vpop.f32.mrb[0].mxu0
    %v417 = vpop.f32.mrb[0].mxu0
    %v418 = vadd.f32 %v67, %v417
    %v419 = vpop.f32.mrb[0].mxu0
    %420 = vdwg.mxu0
    %v421 = vsel %vm346, %v415, -inf
    %422 = vmax.xlane.f32.xlu0 %v421
    %v423 = vpop.xlane.xlu0 %422
    %v424 = vsel %vm346, %v418, -inf
    %425 = vmax.xlane.f32.xlu0 %v424
    %v426 = vpop.xlane.xlu0 %425
    %v427 = vsub.f32 %v415, %v423
    %v428 = vsub.f32 %v418, %v426
    %v429 = vmul.f32 %v427, 1.442695
    %v430 = vpow.pop %v429
    %v431 = vmul.f32 %v428, 1.442695
    %v432 = vpow.pop %v431
    %v433 = vsel %vm346, %v430, 0.0
    %434 = vadd.xlane.f32.xlu0 %v433
    %v435 = vpop.xlane.xlu0 %434
    %v436 = vsel %vm346, %v432, 0.0
    %437 = vadd.xlane.f32.xlu0 %v436
    %v438 = vpop.xlane.xlu0 %437
    %v439 = vrcp.pop %v435
    %v440 = vrcp.pop %v438
    %v441 = vmul.f32 %v430, %v439
    %v442 = vmul.f32 %v432, %v440
    %v443 = vpack.c.bf16 %v442, %v441
    %445 = vrot.lane.b32.xlu0 %v295, 96
    %v446 = vpop.permute.xlu0 %445
    %v449 = vsel %vm346, %v443, 0
    %451 = vmatprep.subr.bf16.mxu0 0
    %452 = vmatpush1.bf16.msra.mxu0 %v446
    %453 = vmatprep.subr.bf16.mxu0 0
    %454 = vmatpush1.bf16.msra.mxu0 0
    %455 = vmatprep.subr.bf16.mxu0 0
    %456 = vmatpush1.bf16.msra.mxu0 0
    %457 = vmatprep.subr.bf16.mxu0 0
    %458 = vmatpush1.bf16.msra.mxu0 0
    %459 = vmatprep.subr.bf16.mxu0 0
    %460 = vmatpush1.bf16.msra.mxu0 0
    %461 = vmatprep.subr.bf16.mxu0 0
    %462 = vmatpush1.bf16.msra.mxu0 0
    %463 = vmatprep.subr.bf16.mxu0 0
    %464 = vmatpush1.bf16.msra.mxu0 0
    %465 = vmatprep.subr.bf16.mxu0 0
    %466 = vmatpush1.bf16.msra.mxu0 0
    %467 = vmatprep.subr.bf16.mxu0 0
    %468 = vmatpush1.bf16.msra.mxu0 0
    %469 = vmatprep.subr.bf16.mxu0 0
    %470 = vmatpush1.bf16.msra.mxu0 0
    %471 = vmatprep.subr.bf16.mxu0 0
    %472 = vmatpush1.bf16.msra.mxu0 0
    %473 = vmatprep.subr.bf16.mxu0 0
    %474 = vmatpush1.bf16.msra.mxu0 0
    %475 = vmatprep.subr.bf16.mxu0 0
    %476 = vmatpush1.bf16.msra.mxu0 0
    %477 = vmatprep.subr.bf16.mxu0 0
    %478 = vmatpush1.bf16.msra.mxu0 0
    %479 = vmatprep.subr.bf16.mxu0 0
    %480 = vmatpush1.bf16.msra.mxu0 0
    %481 = vmatprep.subr.bf16.mxu0 0
    %482 = vmatpush1.bf16.msra.mxu0 0
    %483 = vmatprep.mubr.bf16.mxu0 0
    %484 = vmatmul.mubr.bf16.gmra.mrb[0].mxu0 %v449
    %v485 = vpop.f32.mrb[0].mxu0
    %v486 = vadd.f32 0.0, %v485
    %v487 = vpop.f32.mrb[0].mxu0
    %v488 = vpop.f32.mrb[0].mxu0
    %v489 = vadd.f32 0.0, %v488
    %v490 = vpop.f32.mrb[0].mxu0
    %491 = vdwg.mxu0
    %v493 = vsel %vm346, %v369, 0
    %495 = vmatprep.subr.bf16.mxu0 0
    %496 = vmatpush1.bf16.msra.mxu0 %v295
    %497 = vmatprep.subr.bf16.mxu0 0
    %498 = vmatpush1.bf16.msra.mxu0 0
    %499 = vmatprep.subr.bf16.mxu0 0
    %500 = vmatpush1.bf16.msra.mxu0 0
    %501 = vmatprep.subr.bf16.mxu0 0
    %502 = vmatpush1.bf16.msra.mxu0 0
    %503 = vmatprep.subr.bf16.mxu0 0
    %504 = vmatpush1.bf16.msra.mxu0 0
    %505 = vmatprep.subr.bf16.mxu0 0
    %506 = vmatpush1.bf16.msra.mxu0 0
    %507 = vmatprep.subr.bf16.mxu0 0
    %508 = vmatpush1.bf16.msra.mxu0 0
    %509 = vmatprep.subr.bf16.mxu0 0
    %510 = vmatpush1.bf16.msra.mxu0 0
    %511 = vmatprep.subr.bf16.mxu0 0
    %512 = vmatpush1.bf16.msra.mxu0 0
    %513 = vmatprep.subr.bf16.mxu0 0
    %514 = vmatpush1.bf16.msra.mxu0 0
    %515 = vmatprep.subr.bf16.mxu0 0
    %516 = vmatpush1.bf16.msra.mxu0 0
    %517 = vmatprep.subr.bf16.mxu0 0
    %518 = vmatpush1.bf16.msra.mxu0 0
    %519 = vmatprep.subr.bf16.mxu0 0
    %520 = vmatpush1.bf16.msra.mxu0 0
    %521 = vmatprep.subr.bf16.mxu0 0
    %522 = vmatpush1.bf16.msra.mxu0 0
    %523 = vmatprep.subr.bf16.mxu0 0
    %524 = vmatpush1.bf16.msra.mxu0 0
    %525 = vmatprep.subr.bf16.mxu0 0
    %526 = vmatpush1.bf16.msra.mxu0 0
    %527 = vmatprep.mubr.bf16.mxu0 0
    %528 = vmatmul.mubr.bf16.gmra.mrb[0].mxu0 %v493
    %v529 = vpop.f32.mrb[0].mxu0
    %v530 = vadd.f32 %v486, %v529
    %v531 = vpop.f32.mrb[0].mxu0
    %v532 = vpop.f32.mrb[0].mxu0
    %v533 = vadd.f32 %v489, %v532
    %v534 = vpop.f32.mrb[0].mxu0
    %535 = vdwg.mxu0
    %536 = vrot.lane.b32.xlu0 %v235, 112
    %v537 = vpop.permute.xlu0 %536
    %538 = vrot.lane.b32.xlu0 %v235, 80
    %v539 = vpop.permute.xlu0 %538
    %v541 = vsel %vm298, %v537, 0
    %v544 = vsel %vm298, %v539, 0
    %546 = vmatprep.subr.bf16.mxu0 0
    %547 = vmatpush1.bf16.xpose.msra.mxu0 %v544
    %548 = vmatprep.subr.bf16.mxu0 0
    %549 = vmatpush1.bf16.xpose.msra.mxu0 0
    %550 = vmatprep.subr.bf16.mxu0 0
    %551 = vmatpush1.bf16.xpose.msra.mxu0 0
    %552 = vmatprep.subr.bf16.mxu0 0
    %553 = vmatpush1.bf16.xpose.msra.mxu0 0
    %554 = vmatprep.subr.bf16.mxu0 0
    %555 = vmatpush1.bf16.xpose.msra.mxu0 0
    %556 = vmatprep.subr.bf16.mxu0 0
    %557 = vmatpush1.bf16.xpose.msra.mxu0 0
    %558 = vmatprep.subr.bf16.mxu0 0
    %559 = vmatpush1.bf16.xpose.msra.mxu0 0
    %560 = vmatprep.subr.bf16.mxu0 0
    %561 = vmatpush1.bf16.xpose.msra.mxu0 0
    %562 = vmatprep.subr.bf16.mxu0 0
    %563 = vmatpush1.bf16.xpose.msra.mxu0 0
    %564 = vmatprep.subr.bf16.mxu0 0
    %565 = vmatpush1.bf16.xpose.msra.mxu0 0
    %566 = vmatprep.subr.bf16.mxu0 0
    %567 = vmatpush1.bf16.xpose.msra.mxu0 0
    %568 = vmatprep.subr.bf16.mxu0 0
    %569 = vmatpush1.bf16.xpose.msra.mxu0 0
    %570 = vmatprep.subr.bf16.mxu0 0
    %571 = vmatpush1.bf16.xpose.msra.mxu0 0
    %572 = vmatprep.subr.bf16.mxu0 0
    %573 = vmatpush1.bf16.xpose.msra.mxu0 0
    %574 = vmatprep.subr.bf16.mxu0 0
    %575 = vmatpush1.bf16.xpose.msra.mxu0 0
    %576 = vmatprep.subr.bf16.mxu0 0
    %577 = vmatpush1.bf16.xpose.msra.mxu0 0
    %578 = vmatprep.mubr.bf16.mxu0 0
    %579 = vmatmul.mubr.bf16.gmra.mrb[0].mxu0 %v541
    %v580 = vpop.f32.mrb[0].mxu0
    %v581 = vadd.f32 %v66, %v580
    %v582 = vpop.f32.mrb[0].mxu0
    %v583 = vpop.f32.mrb[0].mxu0
    %v584 = vadd.f32 %v67, %v583
    %v585 = vpop.f32.mrb[0].mxu0
    %586 = vdwg.mxu0
    %v587 = vsel %vm346, %v581, -inf
    %588 = vmax.xlane.f32.xlu0 %v587
    %v589 = vpop.xlane.xlu0 %588
    %v590 = vsel %vm346, %v584, -inf
    %591 = vmax.xlane.f32.xlu0 %v590
    %v592 = vpop.xlane.xlu0 %591
    %v593 = vsub.f32 %v581, %v589
    %v594 = vsub.f32 %v584, %v592
    %v595 = vmul.f32 %v593, 1.442695
    %v596 = vpow.pop %v595
    %v597 = vmul.f32 %v594, 1.442695
    %v598 = vpow.pop %v597
    %v599 = vsel %vm346, %v596, 0.0
    %600 = vadd.xlane.f32.xlu0 %v599
    %v601 = vpop.xlane.xlu0 %600
    %v602 = vsel %vm346, %v598, 0.0
    %603 = vadd.xlane.f32.xlu0 %v602
    %v604 = vpop.xlane.xlu0 %603
    %v605 = vrcp.pop %v601
    %v606 = vrcp.pop %v604
    %v607 = vmul.f32 %v596, %v605
    %v608 = vmul.f32 %v598, %v606
    %v609 = vpack.c.bf16 %v608, %v607
    %610 = vrot.lane.b32.xlu0 %v295, 64
    %v611 = vpop.permute.xlu0 %610
    %v614 = vsel %vm346, %v609, 0
    %616 = vmatprep.subr.bf16.mxu0 0
    %617 = vmatpush1.bf16.msra.mxu0 %v611
    %618 = vmatprep.subr.bf16.mxu0 0
    %619 = vmatpush1.bf16.msra.mxu0 0
    %620 = vmatprep.subr.bf16.mxu0 0
    %621 = vmatpush1.bf16.msra.mxu0 0
    %622 = vmatprep.subr.bf16.mxu0 0
    %623 = vmatpush1.bf16.msra.mxu0 0
    %624 = vmatprep.subr.bf16.mxu0 0
    %625 = vmatpush1.bf16.msra.mxu0 0
    %626 = vmatprep.subr.bf16.mxu0 0
    %627 = vmatpush1.bf16.msra.mxu0 0
    %628 = vmatprep.subr.bf16.mxu0 0
    %629 = vmatpush1.bf16.msra.mxu0 0
    %630 = vmatprep.subr.bf16.mxu0 0
    %631 = vmatpush1.bf16.msra.mxu0 0
    %632 = vmatprep.subr.bf16.mxu0 0
    %633 = vmatpush1.bf16.msra.mxu0 0
    %634 = vmatprep.subr.bf16.mxu0 0
    %635 = vmatpush1.bf16.msra.mxu0 0
    %636 = vmatprep.subr.bf16.mxu0 0
    %637 = vmatpush1.bf16.msra.mxu0 0
    %638 = vmatprep.subr.bf16.mxu0 0
    %639 = vmatpush1.bf16.msra.mxu0 0
    %640 = vmatprep.subr.bf16.mxu0 0
    %641 = vmatpush1.bf16.msra.mxu0 0
    %642 = vmatprep.subr.bf16.mxu0 0
    %643 = vmatpush1.bf16.msra.mxu0 0
    %644 = vmatprep.subr.bf16.mxu0 0
    %645 = vmatpush1.bf16.msra.mxu0 0
    %646 = vmatprep.subr.bf16.mxu0 0
    %647 = vmatpush1.bf16.msra.mxu0 0
    %648 = vmatprep.mubr.bf16.mxu0 0
    %649 = vmatmul.mubr.bf16.gmra.mrb[0].mxu0 %v614
    %v650 = vpop.f32.mrb[0].mxu0
    %v651 = vadd.f32 0.0, %v650
    %v652 = vpop.f32.mrb[0].mxu0
    %v653 = vpop.f32.mrb[0].mxu0
    %v654 = vadd.f32 0.0, %v653
    %v655 = vpop.f32.mrb[0].mxu0
    %656 = vdwg.mxu0
    %v657 = vadd.f32 %v530, %v651
    %v658 = vadd.f32 %v533, %v654
    %659 = vrot.lane.b32.xlu0 %v235, 104
    %v660 = vpop.permute.xlu0 %659
    %661 = vrot.lane.b32.xlu0 %v235, 72
    %v662 = vpop.permute.xlu0 %661
    %v664 = vsel %vm298, %v660, 0
    %v667 = vsel %vm298, %v662, 0
    %669 = vmatprep.subr.bf16.mxu0 0
    %670 = vmatpush1.bf16.xpose.msra.mxu0 %v667
    %671 = vmatprep.subr.bf16.mxu0 0
    %672 = vmatpush1.bf16.xpose.msra.mxu0 0
    %673 = vmatprep.subr.bf16.mxu0 0
    %674 = vmatpush1.bf16.xpose.msra.mxu0 0
    %675 = vmatprep.subr.bf16.mxu0 0
    %676 = vmatpush1.bf16.xpose.msra.mxu0 0
    %677 = vmatprep.subr.bf16.mxu0 0
    %678 = vmatpush1.bf16.xpose.msra.mxu0 0
    %679 = vmatprep.subr.bf16.mxu0 0
    %680 = vmatpush1.bf16.xpose.msra.mxu0 0
    %681 = vmatprep.subr.bf16.mxu0 0
    %682 = vmatpush1.bf16.xpose.msra.mxu0 0
    %683 = vmatprep.subr.bf16.mxu0 0
    %684 = vmatpush1.bf16.xpose.msra.mxu0 0
    %685 = vmatprep.subr.bf16.mxu0 0
    %686 = vmatpush1.bf16.xpose.msra.mxu0 0
    %687 = vmatprep.subr.bf16.mxu0 0
    %688 = vmatpush1.bf16.xpose.msra.mxu0 0
    %689 = vmatprep.subr.bf16.mxu0 0
    %690 = vmatpush1.bf16.xpose.msra.mxu0 0
    %691 = vmatprep.subr.bf16.mxu0 0
    %692 = vmatpush1.bf16.xpose.msra.mxu0 0
    %693 = vmatprep.subr.bf16.mxu0 0
    %694 = vmatpush1.bf16.xpose.msra.mxu0 0
    %695 = vmatprep.subr.bf16.mxu0 0
    %696 = vmatpush1.bf16.xpose.msra.mxu0 0
    %697 = vmatprep.subr.bf16.mxu0 0
    %698 = vmatpush1.bf16.xpose.msra.mxu0 0
    %699 = vmatprep.subr.bf16.mxu0 0
    %700 = vmatpush1.bf16.xpose.msra.mxu0 0
    %701 = vmatprep.mubr.bf16.mxu0 0
    %702 = vmatmul.mubr.bf16.gmra.mrb[0].mxu0 %v664
    %v703 = vpop.f32.mrb[0].mxu0
    %v704 = vadd.f32 %v66, %v703
    %v705 = vpop.f32.mrb[0].mxu0
    %v706 = vpop.f32.mrb[0].mxu0
    %v707 = vadd.f32 %v67, %v706
    %v708 = vpop.f32.mrb[0].mxu0
    %709 = vdwg.mxu0
    %v710 = vsel %vm346, %v704, -inf
    %711 = vmax.xlane.f32.xlu0 %v710
    %v712 = vpop.xlane.xlu0 %711
    %v713 = vsel %vm346, %v707, -inf
    %714 = vmax.xlane.f32.xlu0 %v713
    %v715 = vpop.xlane.xlu0 %714
    %v716 = vsub.f32 %v704, %v712
    %v717 = vsub.f32 %v707, %v715
    %v718 = vmul.f32 %v716, 1.442695
    %v719 = vpow.pop %v718
    %v720 = vmul.f32 %v717, 1.442695
    %v721 = vpow.pop %v720
    %v722 = vsel %vm346, %v719, 0.0
    %723 = vadd.xlane.f32.xlu0 %v722
    %v724 = vpop.xlane.xlu0 %723
    %v725 = vsel %vm346, %v721, 0.0
    %726 = vadd.xlane.f32.xlu0 %v725
    %v727 = vpop.xlane.xlu0 %726
    %v728 = vrcp.pop %v724
    %v729 = vrcp.pop %v727
    %v730 = vmul.f32 %v719, %v728
    %v731 = vmul.f32 %v721, %v729
    %v732 = vpack.c.bf16 %v731, %v730
    %733 = vrot.lane.b32.xlu0 %v295, 32
    %v734 = vpop.permute.xlu0 %733
    %v737 = vsel %vm346, %v732, 0
    %739 = vmatprep.subr.bf16.mxu0 0
    %740 = vmatpush1.bf16.msra.mxu0 %v734
    %741 = vmatprep.subr.bf16.mxu0 0
    %742 = vmatpush1.bf16.msra.mxu0 0
    %743 = vmatprep.subr.bf16.mxu0 0
    %744 = vmatpush1.bf16.msra.mxu0 0
    %745 = vmatprep.subr.bf16.mxu0 0
    %746 = vmatpush1.bf16.msra.mxu0 0
    %747 = vmatprep.subr.bf16.mxu0 0
    %748 = vmatpush1.bf16.msra.mxu0 0
    %749 = vmatprep.subr.bf16.mxu0 0
    %750 = vmatpush1.bf16.msra.mxu0 0
    %751 = vmatprep.subr.bf16.mxu0 0
    %752 = vmatpush1.bf16.msra.mxu0 0
    %753 = vmatprep.subr.bf16.mxu0 0
    %754 = vmatpush1.bf16.msra.mxu0 0
    %755 = vmatprep.subr.bf16.mxu0 0
    %756 = vmatpush1.bf16.msra.mxu0 0
    %757 = vmatprep.subr.bf16.mxu0 0
    %758 = vmatpush1.bf16.msra.mxu0 0
    %759 = vmatprep.subr.bf16.mxu0 0
    %760 = vmatpush1.bf16.msra.mxu0 0
    %761 = vmatprep.subr.bf16.mxu0 0
    %762 = vmatpush1.bf16.msra.mxu0 0
    %763 = vmatprep.subr.bf16.mxu0 0
    %764 = vmatpush1.bf16.msra.mxu0 0
    %765 = vmatprep.subr.bf16.mxu0 0
    %766 = vmatpush1.bf16.msra.mxu0 0
    %767 = vmatprep.subr.bf16.mxu0 0
    %768 = vmatpush1.bf16.msra.mxu0 0
    %769 = vmatprep.subr.bf16.mxu0 0
    %770 = vmatpush1.bf16.msra.mxu0 0
    %771 = vmatprep.mubr.bf16.mxu0 0
    %772 = vmatmul.mubr.bf16.gmra.mrb[0].mxu0 %v737
    %v773 = vpop.f32.mrb[0].mxu0
    %v774 = vadd.f32 0.0, %v773
    %v775 = vpop.f32.mrb[0].mxu0
    %v776 = vpop.f32.mrb[0].mxu0
    %v777 = vadd.f32 0.0, %v776
    %v778 = vpop.f32.mrb[0].mxu0
    %779 = vdwg.mxu0
    %v780 = vadd.f32 %v657, %v774
    %v781 = vadd.f32 %v658, %v777
    %v782 = vadd.f32 %v134, %v780
    %v783 = vadd.f32 %v135, %v781
    %v784 = vlaneseq
    %v785 = vshrl.u32 %v784, 7
    %v786 = vsub.s32 7, %v785
    %v787 = vrot.slane %v58, %v786
    %v788 = vadd.f32 %v782, %v787
    %v789 = vadd.f32 %v783, %v787
    %v790 = vsel %vm96, %v788, 0.0
    %791 = vadd.xlane.f32.xlu0 %v790
    %v792 = vpop.xlane.xlu0 %791
    %v793 = vsel %vm96, %v789, 0.0
    %794 = vadd.xlane.f32.xlu0 %v793
    %v795 = vpop.xlane.xlu0 %794
    %v796 = vmul.f32 %v792, %v103
    %v797 = vmul.f32 %v795, %v103
    %v798 = vsub.f32 %v788, %v796
    %v799 = vsub.f32 %v789, %v797
    %v800 = vmul.f32 %v798, %v798
    %v801 = vmul.f32 %v799, %v799
    %v802 = vsel %vm96, %v800, 0.0
    %803 = vadd.xlane.f32.xlu0 %v802
    %v804 = vpop.xlane.xlu0 %803
    %v805 = vsel %vm96, %v801, 0.0
    %806 = vadd.xlane.f32.xlu0 %v805
    %v807 = vpop.xlane.xlu0 %806
    %v808 = vmul.f32 %v804, %v103
    %v809 = vmul.f32 %v807, %v103
    %v810 = vadd.f32 %v808, 1e-05
    %v811 = vadd.f32 %v809, 1e-05
    %v812 = vrsqrt.pop %v810
    %v813 = vrsqrt.pop %v811
    %v814 = vmul.f32 %v798, %v812
    %v815 = vmul.f32 %v799, %v813
    %v816 = vlaneseq
    %v817 = vshrl.u32 %v816, 7
    %v818 = vsub.s32 4, %v817
    %v819 = vrot.slane %v58, %v818
    %v820 = vmul.f32 %v814, %v819
    %v821 = vmul.f32 %v815, %v819
    %v822 = vlaneseq
    %v823 = vshrl.u32 %v822, 7
    %v824 = vsub.s32 5, %v823
    %v825 = vrot.slane %v58, %v824
    %v826 = vadd.f32 %v820, %v825
    %v827 = vadd.f32 %v821, %v825
    %v828 = vpack.c.bf16 %v827, %v826
    %v829 = vlaneseq
    %v830 = vshrl.u32 %v829, 7
    %v831 = vsub.s32 0, %v830
    %v832 = vrot.slane %v59, %v831
    %v837 = vunpack.c.l.b16 %v76
    %v838 = vunpack.c.l.b16 %v77
    %v839 = vunpack.c.l.b16 %v78
    %v840 = vunpack.c.l.b16 %v79
    %v841 = vpack.c.b16 %v838, %v837
    %v842 = vpack.c.b16 %v840, %v839
    %v846 = vsel %vm96, %v828, 0
    %848 = vmatprep.subr.bf16.mxu0 0
    %849 = vmatpush1.bf16.msra.mxu0 %v841
    %850 = vmatprep.subr.bf16.mxu0 0
    %851 = vmatpush1.bf16.msra.mxu0 %v842
    %852 = vmatprep.subr.bf16.mxu0 0
    %853 = vmatpush1.bf16.msra.mxu0 0
    %854 = vmatprep.subr.bf16.mxu0 0
    %855 = vmatpush1.bf16.msra.mxu0 0
    %856 = vmatprep.subr.bf16.mxu0 0
    %857 = vmatpush1.bf16.msra.mxu0 0
    %858 = vmatprep.subr.bf16.mxu0 0
    %859 = vmatpush1.bf16.msra.mxu0 0
    %860 = vmatprep.subr.bf16.mxu0 0
    %861 = vmatpush1.bf16.msra.mxu0 0
    %862 = vmatprep.subr.bf16.mxu0 0
    %863 = vmatpush1.bf16.msra.mxu0 0
    %864 = vmatprep.subr.bf16.mxu0 0
    %865 = vmatpush1.bf16.msra.mxu0 0
    %866 = vmatprep.subr.bf16.mxu0 0
    %867 = vmatpush1.bf16.msra.mxu0 0
    %868 = vmatprep.subr.bf16.mxu0 0
    %869 = vmatpush1.bf16.msra.mxu0 0
    %870 = vmatprep.subr.bf16.mxu0 0
    %871 = vmatpush1.bf16.msra.mxu0 0
    %872 = vmatprep.subr.bf16.mxu0 0
    %873 = vmatpush1.bf16.msra.mxu0 0
    %874 = vmatprep.subr.bf16.mxu0 0
    %875 = vmatpush1.bf16.msra.mxu0 0
    %876 = vmatprep.subr.bf16.mxu0 0
    %877 = vmatpush1.bf16.msra.mxu0 0
    %878 = vmatprep.subr.bf16.mxu0 0
    %879 = vmatpush1.bf16.msra.mxu0 0
    %880 = vmatprep.mubr.bf16.mxu0 0
    %881 = vmatmul.mubr.bf16.gmra.mrb[0].mxu0 %v846
    %v882 = vpop.f32.mrb[0].mxu0
    %v883 = vadd.f32 %v832, %v882
    %v884 = vpop.f32.mrb[0].mxu0
    %v885 = vpop.f32.mrb[0].mxu0
    %v886 = vadd.f32 %v832, %v885
    %v887 = vpop.f32.mrb[0].mxu0
    %888 = vdwg.mxu0
    %v889 = vmax.f32 %v883, 0.0
    %v890 = vmax.f32 %v886, 0.0
    %v891 = vpack.c.bf16 %v890, %v889
    %v892 = vlaneseq
    %v893 = vshrl.u32 %v892, 7
    %v894 = vsub.s32 1, %v893
    %v895 = vrot.slane %v59, %v894
    %v912 = vunpack.c.l.b16 %v80
    %v913 = vunpack.c.l.b16 %v81
    %v914 = vunpack.c.l.b16 %v82
    %v915 = vunpack.c.l.b16 %v83
    %v916 = vunpack.c.l.b16 %v84
    %v917 = vunpack.c.l.b16 %v85
    %v918 = vunpack.c.l.b16 %v86
    %v919 = vunpack.c.l.b16 %v87
    %v920 = vunpack.c.l.b16 %v88
    %v921 = vunpack.c.l.b16 %v89
    %v922 = vunpack.c.l.b16 %v90
    %v923 = vunpack.c.l.b16 %v91
    %v924 = vunpack.c.l.b16 %v92
    %v925 = vunpack.c.l.b16 %v93
    %v926 = vunpack.c.l.b16 %v94
    %v927 = vunpack.c.l.b16 %v95
    %v928 = vpack.c.b16 %v913, %v912
    %v929 = vpack.c.b16 %v915, %v914
    %v930 = vpack.c.b16 %v917, %v916
    %v931 = vpack.c.b16 %v919, %v918
    %v932 = vpack.c.b16 %v921, %v920
    %v933 = vpack.c.b16 %v923, %v922
    %v934 = vpack.c.b16 %v925, %v924
    %v935 = vpack.c.b16 %v927, %v926
    %944 = vmatprep.subr.bf16.mxu0 0
    %945 = vmatpush1.bf16.msra.mxu0 %v928
    %946 = vmatprep.subr.bf16.mxu0 0
    %947 = vmatpush1.bf16.msra.mxu0 %v929
    %948 = vmatprep.subr.bf16.mxu0 0
    %949 = vmatpush1.bf16.msra.mxu0 %v930
    %950 = vmatprep.subr.bf16.mxu0 0
    %951 = vmatpush1.bf16.msra.mxu0 %v931
    %952 = vmatprep.subr.bf16.mxu0 0
    %953 = vmatpush1.bf16.msra.mxu0 %v932
    %954 = vmatprep.subr.bf16.mxu0 0
    %955 = vmatpush1.bf16.msra.mxu0 %v933
    %956 = vmatprep.subr.bf16.mxu0 0
    %957 = vmatpush1.bf16.msra.mxu0 %v934
    %958 = vmatprep.subr.bf16.mxu0 0
    %959 = vmatpush1.bf16.msra.mxu0 %v935
    %960 = vmatprep.subr.bf16.mxu0 0
    %961 = vmatpush1.bf16.msra.mxu0 0
    %962 = vmatprep.subr.bf16.mxu0 0
    %963 = vmatpush1.bf16.msra.mxu0 0
    %964 = vmatprep.subr.bf16.mxu0 0
    %965 = vmatpush1.bf16.msra.mxu0 0
    %966 = vmatprep.subr.bf16.mxu0 0
    %967 = vmatpush1.bf16.msra.mxu0 0
    %968 = vmatprep.subr.bf16.mxu0 0
    %969 = vmatpush1.bf16.msra.mxu0 0
    %970 = vmatprep.subr.bf16.mxu0 0
    %971 = vmatpush1.bf16.msra.mxu0 0
    %972 = vmatprep.subr.bf16.mxu0 0
    %973 = vmatpush1.bf16.msra.mxu0 0
    %974 = vmatprep.subr.bf16.mxu0 0
    %975 = vmatpush1.bf16.msra.mxu0 0
    %976 = vmatprep.mubr.bf16.mxu0 0
    %977 = vmatmul.mubr.bf16.gmra.mrb[0].mxu0 %v891
    %v978 = vpop.f32.mrb[0].mxu0
    %v979 = vadd.f32 %v895, %v978
    %v980 = vpop.f32.mrb[0].mxu0
    %v981 = vpop.f32.mrb[0].mxu0
    %v982 = vadd.f32 %v895, %v981
    %v983 = vpop.f32.mrb[0].mxu0
    %984 = vdwg.mxu0
    %v985 = vadd.f32 %v56, %v788
    %v986 = vadd.f32 %v57, %v789
    %v987 = vadd.f32 %v985, %v979
    %v988 = vadd.f32 %v986, %v982
    %v989 = vld [vmem:[#allocation6 + $0x70] sm:$0xf]
    %v990 = vld [vmem:[#allocation6 + $0x74] sm:$0xf]
    %v991 = vld [vmem:[#allocation6 + $0x78] sm:$0xf]
    %v992 = vld [vmem:[#allocation6 + $0x7c] sm:$0xf]
    %v993 = vld [vmem:[#allocation6 + $0x80] sm:$0xf]
    %v994 = vld [vmem:[#allocation6 + $0x84] sm:$0xf]
    %v995 = vld [vmem:[#allocation6 + $0x88] sm:$0xf]
    %v996 = vld [vmem:[#allocation6 + $0x8c] sm:$0xf]
    %v997 = vld [vmem:[#allocation6 + $0x90] sm:$0xf]
    %v998 = vld [vmem:[#allocation6 + $0x94] sm:$0xf]
    %v999 = vld [vmem:[#allocation6 + $0x98] sm:$0xf]
    %v1000 = vld [vmem:[#allocation6 + $0x9c] sm:$0xf]
    %v1001 = vld [vmem:[#allocation6 + $0xa0] sm:$0xf]
    %v1002 = vld [vmem:[#allocation6 + $0xa4] sm:$0xf]
    %v1003 = vld [vmem:[#allocation6 + $0xa8] sm:$0xf]
    %v1004 = vld [vmem:[#allocation6 + $0xac] sm:$0xf]
    %v1005 = vld [vmem:[#allocation6 + $0xb0] sm:$0xf]
    %v1006 = vld [vmem:[#allocation6 + $0xb4] sm:$0xf]
    %v1007 = vld [vmem:[#allocation6 + $0xb8] sm:$0xf]
    %v1008 = vld [vmem:[#allocation6 + $0xbc] sm:$0xf]
    %v1009 = vld [vmem:[#allocation6 + $0xc0] sm:$0xf]
    %v1010 = vld [vmem:[#allocation6 + $0xc4] sm:$0xf]
    %v1011 = vld [vmem:[#allocation6 + $0xc8] sm:$0xf]
    %v1012 = vld [vmem:[#allocation6 + $0xcc] sm:$0xf]
    %v1013 = vld [vmem:[#allocation6 + $0xd0] sm:$0xf]
    %v1014 = vld [vmem:[#allocation6 + $0xd4] sm:$0xf]
    %v1015 = vld [vmem:[#allocation6 + $0xd8] sm:$0xf]
    %v1016 = vld [vmem:[#allocation6 + $0xdc] sm:$0xf]
    %v1017 = vsel %vm96, %v987, 0.0
    %1018 = vadd.xlane.f32.xlu0 %v1017
    %v1019 = vpop.xlane.xlu0 %1018
    %v1020 = vsel %vm96, %v988, 0.0
    %1021 = vadd.xlane.f32.xlu0 %v1020
    %v1022 = vpop.xlane.xlu0 %1021
    %v1023 = vmul.f32 %v1019, %v103
    %v1024 = vmul.f32 %v1022, %v103
    %v1025 = vsub.f32 %v987, %v1023
    %v1026 = vsub.f32 %v988, %v1024
    %v1027 = vmul.f32 %v1025, %v1025
    %v1028 = vmul.f32 %v1026, %v1026
    %v1029 = vsel %vm96, %v1027, 0.0
    %1030 = vadd.xlane.f32.xlu0 %v1029
    %v1031 = vpop.xlane.xlu0 %1030
    %v1032 = vsel %vm96, %v1028, 0.0
    %1033 = vadd.xlane.f32.xlu0 %v1032
    %v1034 = vpop.xlane.xlu0 %1033
    %v1035 = vmul.f32 %v1031, %v103
    %v1036 = vmul.f32 %v1034, %v103
    %v1037 = vadd.f32 %v1035, 1e-05
    %v1038 = vadd.f32 %v1036, 1e-05
    %v1039 = vrsqrt.pop %v1037
    %v1040 = vrsqrt.pop %v1038
    %v1041 = vmul.f32 %v1025, %v1039
    %v1042 = vmul.f32 %v1026, %v1040
    %v1043 = vmul.f32 %v1041, %v127
    %v1044 = vmul.f32 %v1042, %v127
    %v1045 = vadd.f32 %v1043, %v133
    %v1046 = vadd.f32 %v1044, %v133
    %v1047 = vsel %vm96, %v1045, 0.0
    %1048 = vadd.xlane.f32.xlu0 %v1047
    %v1049 = vpop.xlane.xlu0 %1048
    %v1050 = vsel %vm96, %v1046, 0.0
    %1051 = vadd.xlane.f32.xlu0 %v1050
    %v1052 = vpop.xlane.xlu0 %1051
    %v1053 = vmul.f32 %v1049, %v103
    %v1054 = vmul.f32 %v1052, %v103
    %v1055 = vsub.f32 %v1045, %v1053
    %v1056 = vsub.f32 %v1046, %v1054
    %v1057 = vmul.f32 %v1055, %v1055
    %v1058 = vmul.f32 %v1056, %v1056
    %v1059 = vsel %vm96, %v1057, 0.0
    %1060 = vadd.xlane.f32.xlu0 %v1059
    %v1061 = vpop.xlane.xlu0 %1060
    %v1062 = vsel %vm96, %v1058, 0.0
    %1063 = vadd.xlane.f32.xlu0 %v1062
    %v1064 = vpop.xlane.xlu0 %1063
    %v1065 = vmul.f32 %v1061, %v103
    %v1066 = vmul.f32 %v1064, %v103
    %v1067 = vadd.f32 %v1065, 1e-05
    %v1068 = vadd.f32 %v1066, 1e-05
    %v1069 = vrsqrt.pop %v1067
    %v1070 = vrsqrt.pop %v1068
    %v1071 = vmul.f32 %v1055, %v1069
    %v1072 = vmul.f32 %v1056, %v1070
    %v1073 = vlaneseq
    %v1074 = vshrl.u32 %v1073, 7
    %v1075 = vsub.s32 2, %v1074
    %v1076 = vrot.slane %v59, %v1075
    %v1077 = vmul.f32 %v1071, %v1076
    %v1078 = vmul.f32 %v1072, %v1076
    %v1079 = vlaneseq
    %v1080 = vshrl.u32 %v1079, 7
    %v1081 = vsub.s32 3, %v1080
    %v1082 = vrot.slane %v59, %v1081
    %v1083 = vadd.f32 %v1077, %v1082
    %v1084 = vadd.f32 %v1078, %v1082
    %v1085 = vpack.c.bf16 %v1084, %v1083
    %v1086 = vlaneseq
    %v1087 = vshrl.u32 %v1086, 7
    %v1088 = vsub.s32 6, %v1087
    %v1089 = vrot.slane %v59, %v1088
    %v1094 = vunpack.c.l.b16 %v989
    %v1095 = vunpack.c.l.b16 %v990
    %v1096 = vunpack.c.l.b16 %v991
    %v1097 = vunpack.c.l.b16 %v992
    %v1098 = vpack.c.b16 %v1095, %v1094
    %v1099 = vpack.c.b16 %v1097, %v1096
    %v1103 = vsel %vm96, %v1085, 0
    %1105 = vmatprep.subr.bf16.mxu0 0
    %1106 = vmatpush1.bf16.msra.mxu0 %v1098
    %1107 = vmatprep.subr.bf16.mxu0 0
    %1108 = vmatpush1.bf16.msra.mxu0 %v1099
    %1109 = vmatprep.subr.bf16.mxu0 0
    %1110 = vmatpush1.bf16.msra.mxu0 0
    %1111 = vmatprep.subr.bf16.mxu0 0
    %1112 = vmatpush1.bf16.msra.mxu0 0
    %1113 = vmatprep.subr.bf16.mxu0 0
    %1114 = vmatpush1.bf16.msra.mxu0 0
    %1115 = vmatprep.subr.bf16.mxu0 0
    %1116 = vmatpush1.bf16.msra.mxu0 0
    %1117 = vmatprep.subr.bf16.mxu0 0
    %1118 = vmatpush1.bf16.msra.mxu0 0
    %1119 = vmatprep.subr.bf16.mxu0 0
    %1120 = vmatpush1.bf16.msra.mxu0 0
    %1121 = vmatprep.subr.bf16.mxu0 0
    %1122 = vmatpush1.bf16.msra.mxu0 0
    %1123 = vmatprep.subr.bf16.mxu0 0
    %1124 = vmatpush1.bf16.msra.mxu0 0
    %1125 = vmatprep.subr.bf16.mxu0 0
    %1126 = vmatpush1.bf16.msra.mxu0 0
    %1127 = vmatprep.subr.bf16.mxu0 0
    %1128 = vmatpush1.bf16.msra.mxu0 0
    %1129 = vmatprep.subr.bf16.mxu0 0
    %1130 = vmatpush1.bf16.msra.mxu0 0
    %1131 = vmatprep.subr.bf16.mxu0 0
    %1132 = vmatpush1.bf16.msra.mxu0 0
    %1133 = vmatprep.subr.bf16.mxu0 0
    %1134 = vmatpush1.bf16.msra.mxu0 0
    %1135 = vmatprep.subr.bf16.mxu0 0
    %1136 = vmatpush1.bf16.msra.mxu0 0
    %1137 = vmatprep.mubr.bf16.mxu0 0
    %1138 = vmatmul.mubr.bf16.gmra.mrb[0].mxu0 %v1103
    %v1139 = vpop.f32.mrb[0].mxu0
    %v1140 = vadd.f32 %v1089, %v1139
    %v1141 = vpop.f32.mrb[0].mxu0
    %v1142 = vpop.f32.mrb[0].mxu0
    %v1143 = vadd.f32 %v1089, %v1142
    %v1144 = vpop.f32.mrb[0].mxu0
    %1145 = vdwg.mxu0
    %v1146 = vpack.c.bf16 %v1143, %v1140
    %1148 = vrot.lane.b32.xlu0 %v1146, 64
    %v1149 = vpop.permute.xlu0 %1148
    %v1154 = vunpack.c.l.b16 %v993
    %v1155 = vunpack.c.l.b16 %v994
    %v1156 = vunpack.c.l.b16 %v995
    %v1157 = vunpack.c.l.b16 %v996
    %v1158 = vpack.c.b16 %v1155, %v1154
    %v1159 = vpack.c.b16 %v1157, %v1156
    %v1163 = vsel %vm96, %v1149, 0
    %1165 = vmatprep.subr.bf16.mxu0 0
    %1166 = vmatpush1.bf16.msra.mxu0 %v1158
    %1167 = vmatprep.subr.bf16.mxu0 0
    %1168 = vmatpush1.bf16.msra.mxu0 %v1159
    %1169 = vmatprep.subr.bf16.mxu0 0
    %1170 = vmatpush1.bf16.msra.mxu0 0
    %1171 = vmatprep.subr.bf16.mxu0 0
    %1172 = vmatpush1.bf16.msra.mxu0 0
    %1173 = vmatprep.subr.bf16.mxu0 0
    %1174 = vmatpush1.bf16.msra.mxu0 0
    %1175 = vmatprep.subr.bf16.mxu0 0
    %1176 = vmatpush1.bf16.msra.mxu0 0
    %1177 = vmatprep.subr.bf16.mxu0 0
    %1178 = vmatpush1.bf16.msra.mxu0 0
    %1179 = vmatprep.subr.bf16.mxu0 0
    %1180 = vmatpush1.bf16.msra.mxu0 0
    %1181 = vmatprep.subr.bf16.mxu0 0
    %1182 = vmatpush1.bf16.msra.mxu0 0
    %1183 = vmatprep.subr.bf16.mxu0 0
    %1184 = vmatpush1.bf16.msra.mxu0 0
    %1185 = vmatprep.subr.bf16.mxu0 0
    %1186 = vmatpush1.bf16.msra.mxu0 0
    %1187 = vmatprep.subr.bf16.mxu0 0
    %1188 = vmatpush1.bf16.msra.mxu0 0
    %1189 = vmatprep.subr.bf16.mxu0 0
    %1190 = vmatpush1.bf16.msra.mxu0 0
    %1191 = vmatprep.subr.bf16.mxu0 0
    %1192 = vmatpush1.bf16.msra.mxu0 0
    %1193 = vmatprep.subr.bf16.mxu0 0
    %1194 = vmatpush1.bf16.msra.mxu0 0
    %1195 = vmatprep.subr.bf16.mxu0 0
    %1196 = vmatpush1.bf16.msra.mxu0 0
    %1197 = vmatprep.mubr.bf16.mxu0 0
    %1198 = vmatmul.mubr.bf16.gmra.mrb[0].mxu0 %v1163
    %v1199 = vpop.f32.mrb[0].mxu0
    %v1200 = vadd.f32 0.0, %v1199
    %v1201 = vpop.f32.mrb[0].mxu0
    %v1202 = vpop.f32.mrb[0].mxu0
    %v1203 = vadd.f32 0.0, %v1202
    %v1204 = vpop.f32.mrb[0].mxu0
    %1205 = vdwg.mxu0
    %v1206 = vpack.c.bf16 %v1203, %v1200
    %1207 = vrot.lane.b32.xlu0 %v1146, 96
    %v1208 = vpop.permute.xlu0 %1207
    %v1210 = vsel %vm298, %v1146, 0
    %v1213 = vsel %vm298, %v1208, 0
    %1215 = vmatprep.subr.bf16.mxu0 0
    %1216 = vmatpush1.bf16.xpose.msra.mxu0 %v1213
    %1217 = vmatprep.subr.bf16.mxu0 0
    %1218 = vmatpush1.bf16.xpose.msra.mxu0 0
    %1219 = vmatprep.subr.bf16.mxu0 0
    %1220 = vmatpush1.bf16.xpose.msra.mxu0 0
    %1221 = vmatprep.subr.bf16.mxu0 0
    %1222 = vmatpush1.bf16.xpose.msra.mxu0 0
    %1223 = vmatprep.subr.bf16.mxu0 0
    %1224 = vmatpush1.bf16.xpose.msra.mxu0 0
    %1225 = vmatprep.subr.bf16.mxu0 0
    %1226 = vmatpush1.bf16.xpose.msra.mxu0 0
    %1227 = vmatprep.subr.bf16.mxu0 0
    %1228 = vmatpush1.bf16.xpose.msra.mxu0 0
    %1229 = vmatprep.subr.bf16.mxu0 0
    %1230 = vmatpush1.bf16.xpose.msra.mxu0 0
    %1231 = vmatprep.subr.bf16.mxu0 0
    %1232 = vmatpush1.bf16.xpose.msra.mxu0 0
    %1233 = vmatprep.subr.bf16.mxu0 0
    %1234 = vmatpush1.bf16.xpose.msra.mxu0 0
    %1235 = vmatprep.subr.bf16.mxu0 0
    %1236 = vmatpush1.bf16.xpose.msra.mxu0 0
    %1237 = vmatprep.subr.bf16.mxu0 0
    %1238 = vmatpush1.bf16.xpose.msra.mxu0 0
    %1239 = vmatprep.subr.bf16.mxu0 0
    %1240 = vmatpush1.bf16.xpose.msra.mxu0 0
    %1241 = vmatprep.subr.bf16.mxu0 0
    %1242 = vmatpush1.bf16.xpose.msra.mxu0 0
    %1243 = vmatprep.subr.bf16.mxu0 0
    %1244 = vmatpush1.bf16.xpose.msra.mxu0 0
    %1245 = vmatprep.subr.bf16.mxu0 0
    %1246 = vmatpush1.bf16.xpose.msra.mxu0 0
    %1247 = vmatprep.mubr.bf16.mxu0 0
    %1248 = vmatmul.mubr.bf16.gmra.mrb[0].mxu0 %v1210
    %v1249 = vpop.f32.mrb[0].mxu0
    %v1250 = vadd.f32 %v66, %v1249
    %v1251 = vpop.f32.mrb[0].mxu0
    %v1252 = vpop.f32.mrb[0].mxu0
    %v1253 = vadd.f32 %v67, %v1252
    %v1254 = vpop.f32.mrb[0].mxu0
    %1255 = vdwg.mxu0
    %v1256 = vsel %vm346, %v1250, -inf
    %1257 = vmax.xlane.f32.xlu0 %v1256
    %v1258 = vpop.xlane.xlu0 %1257
    %v1259 = vsel %vm346, %v1253, -inf
    %1260 = vmax.xlane.f32.xlu0 %v1259
    %v1261 = vpop.xlane.xlu0 %1260
    %v1262 = vsub.f32 %v1250, %v1258
    %v1263 = vsub.f32 %v1253, %v1261
    %v1264 = vmul.f32 %v1262, 1.442695
    %v1265 = vpow.pop %v1264
    %v1266 = vmul.f32 %v1263, 1.442695
    %v1267 = vpow.pop %v1266
    %v1268 = vsel %vm346, %v1265, 0.0
    %1269 = vadd.xlane.f32.xlu0 %v1268
    %v1270 = vpop.xlane.xlu0 %1269
    %v1271 = vsel %vm346, %v1267, 0.0
    %1272 = vadd.xlane.f32.xlu0 %v1271
    %v1273 = vpop.xlane.xlu0 %1272
    %v1274 = vrcp.pop %v1270
    %v1275 = vrcp.pop %v1273
    %v1276 = vmul.f32 %v1265, %v1274
    %v1277 = vmul.f32 %v1267, %v1275
    %v1278 = vpack.c.bf16 %v1277, %v1276
    %1279 = vrot.lane.b32.xlu0 %v1146, 120
    %v1280 = vpop.permute.xlu0 %1279
    %1281 = vrot.lane.b32.xlu0 %v1146, 88
    %v1282 = vpop.permute.xlu0 %1281
    %v1284 = vsel %vm298, %v1280, 0
    %v1287 = vsel %vm298, %v1282, 0
    %1289 = vmatprep.subr.bf16.mxu0 0
    %1290 = vmatpush1.bf16.xpose.msra.mxu0 %v1287
    %1291 = vmatprep.subr.bf16.mxu0 0
    %1292 = vmatpush1.bf16.xpose.msra.mxu0 0
    %1293 = vmatprep.subr.bf16.mxu0 0
    %1294 = vmatpush1.bf16.xpose.msra.mxu0 0
    %1295 = vmatprep.subr.bf16.mxu0 0
    %1296 = vmatpush1.bf16.xpose.msra.mxu0 0
    %1297 = vmatprep.subr.bf16.mxu0 0
    %1298 = vmatpush1.bf16.xpose.msra.mxu0 0
    %1299 = vmatprep.subr.bf16.mxu0 0
    %1300 = vmatpush1.bf16.xpose.msra.mxu0 0
    %1301 = vmatprep.subr.bf16.mxu0 0
    %1302 = vmatpush1.bf16.xpose.msra.mxu0 0
    %1303 = vmatprep.subr.bf16.mxu0 0
    %1304 = vmatpush1.bf16.xpose.msra.mxu0 0
    %1305 = vmatprep.subr.bf16.mxu0 0
    %1306 = vmatpush1.bf16.xpose.msra.mxu0 0
    %1307 = vmatprep.subr.bf16.mxu0 0
    %1308 = vmatpush1.bf16.xpose.msra.mxu0 0
    %1309 = vmatprep.subr.bf16.mxu0 0
    %1310 = vmatpush1.bf16.xpose.msra.mxu0 0
    %1311 = vmatprep.subr.bf16.mxu0 0
    %1312 = vmatpush1.bf16.xpose.msra.mxu0 0
    %1313 = vmatprep.subr.bf16.mxu0 0
    %1314 = vmatpush1.bf16.xpose.msra.mxu0 0
    %1315 = vmatprep.subr.bf16.mxu0 0
    %1316 = vmatpush1.bf16.xpose.msra.mxu0 0
    %1317 = vmatprep.subr.bf16.mxu0 0
    %1318 = vmatpush1.bf16.xpose.msra.mxu0 0
    %1319 = vmatprep.subr.bf16.mxu0 0
    %1320 = vmatpush1.bf16.xpose.msra.mxu0 0
    %1321 = vmatprep.mubr.bf16.mxu0 0
    %1322 = vmatmul.mubr.bf16.gmra.mrb[0].mxu0 %v1284
    %v1323 = vpop.f32.mrb[0].mxu0
    %v1324 = vadd.f32 %v66, %v1323
    %v1325 = vpop.f32.mrb[0].mxu0
    %v1326 = vpop.f32.mrb[0].mxu0
    %v1327 = vadd.f32 %v67, %v1326
    %v1328 = vpop.f32.mrb[0].mxu0
    %1329 = vdwg.mxu0
    %v1330 = vsel %vm346, %v1324, -inf
    %1331 = vmax.xlane.f32.xlu0 %v1330
    %v1332 = vpop.xlane.xlu0 %1331
    %v1333 = vsel %vm346, %v1327, -inf
    %1334 = vmax.xlane.f32.xlu0 %v1333
    %v1335 = vpop.xlane.xlu0 %1334
    %v1336 = vsub.f32 %v1324, %v1332
    %v1337 = vsub.f32 %v1327, %v1335
    %v1338 = vmul.f32 %v1336, 1.442695
    %v1339 = vpow.pop %v1338
    %v1340 = vmul.f32 %v1337, 1.442695
    %v1341 = vpow.pop %v1340
    %v1342 = vsel %vm346, %v1339, 0.0
    %1343 = vadd.xlane.f32.xlu0 %v1342
    %v1344 = vpop.xlane.xlu0 %1343
    %v1345 = vsel %vm346, %v1341, 0.0
    %1346 = vadd.xlane.f32.xlu0 %v1345
    %v1347 = vpop.xlane.xlu0 %1346
    %v1348 = vrcp.pop %v1344
    %v1349 = vrcp.pop %v1347
    %v1350 = vmul.f32 %v1339, %v1348
    %v1351 = vmul.f32 %v1341, %v1349
    %v1352 = vpack.c.bf16 %v1351, %v1350
    %1354 = vrot.lane.b32.xlu0 %v1206, 96
    %v1355 = vpop.permute.xlu0 %1354
    %v1358 = vsel %vm346, %v1352, 0
    %1360 = vmatprep.subr.bf16.mxu0 0
    %1361 = vmatpush1.bf16.msra.mxu0 %v1355
    %1362 = vmatprep.subr.bf16.mxu0 0
    %1363 = vmatpush1.bf16.msra.mxu0 0
    %1364 = vmatprep.subr.bf16.mxu0 0
    %1365 = vmatpush1.bf16.msra.mxu0 0
    %1366 = vmatprep.subr.bf16.mxu0 0
    %1367 = vmatpush1.bf16.msra.mxu0 0
    %1368 = vmatprep.subr.bf16.mxu0 0
    %1369 = vmatpush1.bf16.msra.mxu0 0
    %1370 = vmatprep.subr.bf16.mxu0 0
    %1371 = vmatpush1.bf16.msra.mxu0 0
    %1372 = vmatprep.subr.bf16.mxu0 0
    %1373 = vmatpush1.bf16.msra.mxu0 0
    %1374 = vmatprep.subr.bf16.mxu0 0
    %1375 = vmatpush1.bf16.msra.mxu0 0
    %1376 = vmatprep.subr.bf16.mxu0 0
    %1377 = vmatpush1.bf16.msra.mxu0 0
    %1378 = vmatprep.subr.bf16.mxu0 0
    %1379 = vmatpush1.bf16.msra.mxu0 0
    %1380 = vmatprep.subr.bf16.mxu0 0
    %1381 = vmatpush1.bf16.msra.mxu0 0
    %1382 = vmatprep.subr.bf16.mxu0 0
    %1383 = vmatpush1.bf16.msra.mxu0 0
    %1384 = vmatprep.subr.bf16.mxu0 0
    %1385 = vmatpush1.bf16.msra.mxu0 0
    %1386 = vmatprep.subr.bf16.mxu0 0
    %1387 = vmatpush1.bf16.msra.mxu0 0
    %1388 = vmatprep.subr.bf16.mxu0 0
    %1389 = vmatpush1.bf16.msra.mxu0 0
    %1390 = vmatprep.subr.bf16.mxu0 0
    %1391 = vmatpush1.bf16.msra.mxu0 0
    %1392 = vmatprep.mubr.bf16.mxu0 0
    %1393 = vmatmul.mubr.bf16.gmra.mrb[0].mxu0 %v1358
    %v1394 = vpop.f32.mrb[0].mxu0
    %v1395 = vadd.f32 0.0, %v1394
    %v1396 = vpop.f32.mrb[0].mxu0
    %v1397 = vpop.f32.mrb[0].mxu0
    %v1398 = vadd.f32 0.0, %v1397
    %v1399 = vpop.f32.mrb[0].mxu0
    %1400 = vdwg.mxu0
    %v1402 = vsel %vm346, %v1278, 0
    %1404 = vmatprep.subr.bf16.mxu0 0
    %1405 = vmatpush1.bf16.msra.mxu0 %v1206
    %1406 = vmatprep.subr.bf16.mxu0 0
    %1407 = vmatpush1.bf16.msra.mxu0 0
    %1408 = vmatprep.subr.bf16.mxu0 0
    %1409 = vmatpush1.bf16.msra.mxu0 0
    %1410 = vmatprep.subr.bf16.mxu0 0
    %1411 = vmatpush1.bf16.msra.mxu0 0
    %1412 = vmatprep.subr.bf16.mxu0 0
    %1413 = vmatpush1.bf16.msra.mxu0 0
    %1414 = vmatprep.subr.bf16.mxu0 0
    %1415 = vmatpush1.bf16.msra.mxu0 0
    %1416 = vmatprep.subr.bf16.mxu0 0
    %1417 = vmatpush1.bf16.msra.mxu0 0
    %1418 = vmatprep.subr.bf16.mxu0 0
    %1419 = vmatpush1.bf16.msra.mxu0 0
    %1420 = vmatprep.subr.bf16.mxu0 0
    %1421 = vmatpush1.bf16.msra.mxu0 0
    %1422 = vmatprep.subr.bf16.mxu0 0
    %1423 = vmatpush1.bf16.msra.mxu0 0
    %1424 = vmatprep.subr.bf16.mxu0 0
    %1425 = vmatpush1.bf16.msra.mxu0 0
    %1426 = vmatprep.subr.bf16.mxu0 0
    %1427 = vmatpush1.bf16.msra.mxu0 0
    %1428 = vmatprep.subr.bf16.mxu0 0
    %1429 = vmatpush1.bf16.msra.mxu0 0
    %1430 = vmatprep.subr.bf16.mxu0 0
    %1431 = vmatpush1.bf16.msra.mxu0 0
    %1432 = vmatprep.subr.bf16.mxu0 0
    %1433 = vmatpush1.bf16.msra.mxu0 0
    %1434 = vmatprep.subr.bf16.mxu0 0
    %1435 = vmatpush1.bf16.msra.mxu0 0
    %1436 = vmatprep.mubr.bf16.mxu0 0
    %1437 = vmatmul.mubr.bf16.gmra.mrb[0].mxu0 %v1402
    %v1438 = vpop.f32.mrb[0].mxu0
    %v1439 = vadd.f32 %v1395, %v1438
    %v1440 = vpop.f32.mrb[0].mxu0
    %v1441 = vpop.f32.mrb[0].mxu0
    %v1442 = vadd.f32 %v1398, %v1441
    %v1443 = vpop.f32.mrb[0].mxu0
    %1444 = vdwg.mxu0
    %1445 = vrot.lane.b32.xlu0 %v1146, 112
    %v1446 = vpop.permute.xlu0 %1445
    %1447 = vrot.lane.b32.xlu0 %v1146, 80
    %v1448 = vpop.permute.xlu0 %1447
    %v1450 = vsel %vm298, %v1446, 0
    %v1453 = vsel %vm298, %v1448, 0
    %1455 = vmatprep.subr.bf16.mxu0 0
    %1456 = vmatpush1.bf16.xpose.msra.mxu0 %v1453
    %1457 = vmatprep.subr.bf16.mxu0 0
    %1458 = vmatpush1.bf16.xpose.msra.mxu0 0
    %1459 = vmatprep.subr.bf16.mxu0 0
    %1460 = vmatpush1.bf16.xpose.msra.mxu0 0
    %1461 = vmatprep.subr.bf16.mxu0 0
    %1462 = vmatpush1.bf16.xpose.msra.mxu0 0
    %1463 = vmatprep.subr.bf16.mxu0 0
    %1464 = vmatpush1.bf16.xpose.msra.mxu0 0
    %1465 = vmatprep.subr.bf16.mxu0 0
    %1466 = vmatpush1.bf16.xpose.msra.mxu0 0
    %1467 = vmatprep.subr.bf16.mxu0 0
    %1468 = vmatpush1.bf16.xpose.msra.mxu0 0
    %1469 = vmatprep.subr.bf16.mxu0 0
    %1470 = vmatpush1.bf16.xpose.msra.mxu0 0
    %1471 = vmatprep.subr.bf16.mxu0 0
    %1472 = vmatpush1.bf16.xpose.msra.mxu0 0
    %1473 = vmatprep.subr.bf16.mxu0 0
    %1474 = vmatpush1.bf16.xpose.msra.mxu0 0
    %1475 = vmatprep.subr.bf16.mxu0 0
    %1476 = vmatpush1.bf16.xpose.msra.mxu0 0
    %1477 = vmatprep.subr.bf16.mxu0 0
    %1478 = vmatpush1.bf16.xpose.msra.mxu0 0
    %1479 = vmatprep.subr.bf16.mxu0 0
    %1480 = vmatpush1.bf16.xpose.msra.mxu0 0
    %1481 = vmatprep.subr.bf16.mxu0 0
    %1482 = vmatpush1.bf16.xpose.msra.mxu0 0
    %1483 = vmatprep.subr.bf16.mxu0 0
    %1484 = vmatpush1.bf16.xpose.msra.mxu0 0
    %1485 = vmatprep.subr.bf16.mxu0 0
    %1486 = vmatpush1.bf16.xpose.msra.mxu0 0
    %1487 = vmatprep.mubr.bf16.mxu0 0
    %1488 = vmatmul.mubr.bf16.gmra.mrb[0].mxu0 %v1450
    %v1489 = vpop.f32.mrb[0].mxu0
    %v1490 = vadd.f32 %v66, %v1489
    %v1491 = vpop.f32.mrb[0].mxu0
    %v1492 = vpop.f32.mrb[0].mxu0
    %v1493 = vadd.f32 %v67, %v1492
    %v1494 = vpop.f32.mrb[0].mxu0
    %1495 = vdwg.mxu0
    %v1496 = vsel %vm346, %v1490, -inf
    %1497 = vmax.xlane.f32.xlu0 %v1496
    %v1498 = vpop.xlane.xlu0 %1497
    %v1499 = vsel %vm346, %v1493, -inf
    %1500 = vmax.xlane.f32.xlu0 %v1499
    %v1501 = vpop.xlane.xlu0 %1500
    %v1502 = vsub.f32 %v1490, %v1498
    %v1503 = vsub.f32 %v1493, %v1501
    %v1504 = vmul.f32 %v1502, 1.442695
    %v1505 = vpow.pop %v1504
    %v1506 = vmul.f32 %v1503, 1.442695
    %v1507 = vpow.pop %v1506
    %v1508 = vsel %vm346, %v1505, 0.0
    %1509 = vadd.xlane.f32.xlu0 %v1508
    %v1510 = vpop.xlane.xlu0 %1509
    %v1511 = vsel %vm346, %v1507, 0.0
    %1512 = vadd.xlane.f32.xlu0 %v1511
    %v1513 = vpop.xlane.xlu0 %1512
    %v1514 = vrcp.pop %v1510
    %v1515 = vrcp.pop %v1513
    %v1516 = vmul.f32 %v1505, %v1514
    %v1517 = vmul.f32 %v1507, %v1515
    %v1518 = vpack.c.bf16 %v1517, %v1516
    %1519 = vrot.lane.b32.xlu0 %v1206, 64
    %v1520 = vpop.permute.xlu0 %1519
    %v1523 = vsel %vm346, %v1518, 0
    %1525 = vmatprep.subr.bf16.mxu0 0
    %1526 = vmatpush1.bf16.msra.mxu0 %v1520
    %1527 = vmatprep.subr.bf16.mxu0 0
    %1528 = vmatpush1.bf16.msra.mxu0 0
    %1529 = vmatprep.subr.bf16.mxu0 0
    %1530 = vmatpush1.bf16.msra.mxu0 0
    %1531 = vmatprep.subr.bf16.mxu0 0
    %1532 = vmatpush1.bf16.msra.mxu0 0
    %1533 = vmatprep.subr.bf16.mxu0 0
    %1534 = vmatpush1.bf16.msra.mxu0 0
    %1535 = vmatprep.subr.bf16.mxu0 0
    %1536 = vmatpush1.bf16.msra.mxu0 0
    %1537 = vmatprep.subr.bf16.mxu0 0
    %1538 = vmatpush1.bf16.msra.mxu0 0
    %1539 = vmatprep.subr.bf16.mxu0 0
    %1540 = vmatpush1.bf16.msra.mxu0 0
    %1541 = vmatprep.subr.bf16.mxu0 0
    %1542 = vmatpush1.bf16.msra.mxu0 0
    %1543 = vmatprep.subr.bf16.mxu0 0
    %1544 = vmatpush1.bf16.msra.mxu0 0
    %1545 = vmatprep.subr.bf16.mxu0 0
    %1546 = vmatpush1.bf16.msra.mxu0 0
    %1547 = vmatprep.subr.bf16.mxu0 0
    %1548 = vmatpush1.bf16.msra.mxu0 0
    %1549 = vmatprep.subr.bf16.mxu0 0
    %1550 = vmatpush1.bf16.msra.mxu0 0
    %1551 = vmatprep.subr.bf16.mxu0 0
    %1552 = vmatpush1.bf16.msra.mxu0 0
    %1553 = vmatprep.subr.bf16.mxu0 0
    %1554 = vmatpush1.bf16.msra.mxu0 0
    %1555 = vmatprep.subr.bf16.mxu0 0
    %1556 = vmatpush1.bf16.msra.mxu0 0
    %1557 = vmatprep.mubr.bf16.mxu0 0
    %1558 = vmatmul.mubr.bf16.gmra.mrb[0].mxu0 %v1523
    %v1559 = vpop.f32.mrb[0].mxu0
    %v1560 = vadd.f32 0.0, %v1559
    %v1561 = vpop.f32.mrb[0].mxu0
    %v1562 = vpop.f32.mrb[0].mxu0
    %v1563 = vadd.f32 0.0, %v1562
    %v1564 = vpop.f32.mrb[0].mxu0
    %1565 = vdwg.mxu0
    %v1566 = vadd.f32 %v1439, %v1560
    %v1567 = vadd.f32 %v1442, %v1563
    %1568 = vrot.lane.b32.xlu0 %v1146, 104
    %v1569 = vpop.permute.xlu0 %1568
    %1570 = vrot.lane.b32.xlu0 %v1146, 72
    %v1571 = vpop.permute.xlu0 %1570
    %v1573 = vsel %vm298, %v1569, 0
    %v1576 = vsel %vm298, %v1571, 0
    %1578 = vmatprep.subr.bf16.mxu0 0
    %1579 = vmatpush1.bf16.xpose.msra.mxu0 %v1576
    %1580 = vmatprep.subr.bf16.mxu0 0
    %1581 = vmatpush1.bf16.xpose.msra.mxu0 0
    %1582 = vmatprep.subr.bf16.mxu0 0
    %1583 = vmatpush1.bf16.xpose.msra.mxu0 0
    %1584 = vmatprep.subr.bf16.mxu0 0
    %1585 = vmatpush1.bf16.xpose.msra.mxu0 0
    %1586 = vmatprep.subr.bf16.mxu0 0
    %1587 = vmatpush1.bf16.xpose.msra.mxu0 0
    %1588 = vmatprep.subr.bf16.mxu0 0
    %1589 = vmatpush1.bf16.xpose.msra.mxu0 0
    %1590 = vmatprep.subr.bf16.mxu0 0
    %1591 = vmatpush1.bf16.xpose.msra.mxu0 0
    %1592 = vmatprep.subr.bf16.mxu0 0
    %1593 = vmatpush1.bf16.xpose.msra.mxu0 0
    %1594 = vmatprep.subr.bf16.mxu0 0
    %1595 = vmatpush1.bf16.xpose.msra.mxu0 0
    %1596 = vmatprep.subr.bf16.mxu0 0
    %1597 = vmatpush1.bf16.xpose.msra.mxu0 0
    %1598 = vmatprep.subr.bf16.mxu0 0
    %1599 = vmatpush1.bf16.xpose.msra.mxu0 0
    %1600 = vmatprep.subr.bf16.mxu0 0
    %1601 = vmatpush1.bf16.xpose.msra.mxu0 0
    %1602 = vmatprep.subr.bf16.mxu0 0
    %1603 = vmatpush1.bf16.xpose.msra.mxu0 0
    %1604 = vmatprep.subr.bf16.mxu0 0
    %1605 = vmatpush1.bf16.xpose.msra.mxu0 0
    %1606 = vmatprep.subr.bf16.mxu0 0
    %1607 = vmatpush1.bf16.xpose.msra.mxu0 0
    %1608 = vmatprep.subr.bf16.mxu0 0
    %1609 = vmatpush1.bf16.xpose.msra.mxu0 0
    %1610 = vmatprep.mubr.bf16.mxu0 0
    %1611 = vmatmul.mubr.bf16.gmra.mrb[0].mxu0 %v1573
    %v1612 = vpop.f32.mrb[0].mxu0
    %v1613 = vadd.f32 %v66, %v1612
    %v1614 = vpop.f32.mrb[0].mxu0
    %v1615 = vpop.f32.mrb[0].mxu0
    %v1616 = vadd.f32 %v67, %v1615
    %v1617 = vpop.f32.mrb[0].mxu0
    %1618 = vdwg.mxu0
    %v1619 = vsel %vm346, %v1613, -inf
    %1620 = vmax.xlane.f32.xlu0 %v1619
    %v1621 = vpop.xlane.xlu0 %1620
    %v1622 = vsel %vm346, %v1616, -inf
    %1623 = vmax.xlane.f32.xlu0 %v1622
    %v1624 = vpop.xlane.xlu0 %1623
    %v1625 = vsub.f32 %v1613, %v1621
    %v1626 = vsub.f32 %v1616, %v1624
    %v1627 = vmul.f32 %v1625, 1.442695
    %v1628 = vpow.pop %v1627
    %v1629 = vmul.f32 %v1626, 1.442695
    %v1630 = vpow.pop %v1629
    %v1631 = vsel %vm346, %v1628, 0.0
    %1632 = vadd.xlane.f32.xlu0 %v1631
    %v1633 = vpop.xlane.xlu0 %1632
    %v1634 = vsel %vm346, %v1630, 0.0
    %1635 = vadd.xlane.f32.xlu0 %v1634
    %v1636 = vpop.xlane.xlu0 %1635
    %v1637 = vrcp.pop %v1633
    %v1638 = vrcp.pop %v1636
    %v1639 = vmul.f32 %v1628, %v1637
    %v1640 = vmul.f32 %v1630, %v1638
    %v1641 = vpack.c.bf16 %v1640, %v1639
    %1642 = vrot.lane.b32.xlu0 %v1206, 32
    %v1643 = vpop.permute.xlu0 %1642
    %v1646 = vsel %vm346, %v1641, 0
    %1648 = vmatprep.subr.bf16.mxu0 0
    %1649 = vmatpush1.bf16.msra.mxu0 %v1643
    %1650 = vmatprep.subr.bf16.mxu0 0
    %1651 = vmatpush1.bf16.msra.mxu0 0
    %1652 = vmatprep.subr.bf16.mxu0 0
    %1653 = vmatpush1.bf16.msra.mxu0 0
    %1654 = vmatprep.subr.bf16.mxu0 0
    %1655 = vmatpush1.bf16.msra.mxu0 0
    %1656 = vmatprep.subr.bf16.mxu0 0
    %1657 = vmatpush1.bf16.msra.mxu0 0
    %1658 = vmatprep.subr.bf16.mxu0 0
    %1659 = vmatpush1.bf16.msra.mxu0 0
    %1660 = vmatprep.subr.bf16.mxu0 0
    %1661 = vmatpush1.bf16.msra.mxu0 0
    %1662 = vmatprep.subr.bf16.mxu0 0
    %1663 = vmatpush1.bf16.msra.mxu0 0
    %1664 = vmatprep.subr.bf16.mxu0 0
    %1665 = vmatpush1.bf16.msra.mxu0 0
    %1666 = vmatprep.subr.bf16.mxu0 0
    %1667 = vmatpush1.bf16.msra.mxu0 0
    %1668 = vmatprep.subr.bf16.mxu0 0
    %1669 = vmatpush1.bf16.msra.mxu0 0
    %1670 = vmatprep.subr.bf16.mxu0 0
    %1671 = vmatpush1.bf16.msra.mxu0 0
    %1672 = vmatprep.subr.bf16.mxu0 0
    %1673 = vmatpush1.bf16.msra.mxu0 0
    %1674 = vmatprep.subr.bf16.mxu0 0
    %1675 = vmatpush1.bf16.msra.mxu0 0
    %1676 = vmatprep.subr.bf16.mxu0 0
    %1677 = vmatpush1.bf16.msra.mxu0 0
    %1678 = vmatprep.subr.bf16.mxu0 0
    %1679 = vmatpush1.bf16.msra.mxu0 0
    %1680 = vmatprep.mubr.bf16.mxu0 0
    %1681 = vmatmul.mubr.bf16.gmra.mrb[0].mxu0 %v1646
    %v1682 = vpop.f32.mrb[0].mxu0
    %v1683 = vadd.f32 0.0, %v1682
    %v1684 = vpop.f32.mrb[0].mxu0
    %v1685 = vpop.f32.mrb[0].mxu0
    %v1686 = vadd.f32 0.0, %v1685
    %v1687 = vpop.f32.mrb[0].mxu0
    %1688 = vdwg.mxu0
    %v1689 = vadd.f32 %v1566, %v1683
    %v1690 = vadd.f32 %v1567, %v1686
    %v1691 = vadd.f32 %v1045, %v1689
    %v1692 = vadd.f32 %v1046, %v1690
    %v1693 = vlaneseq
    %v1694 = vshrl.u32 %v1693, 7
    %v1695 = vsub.s32 7, %v1694
    %v1696 = vrot.slane %v59, %v1695
    %v1697 = vadd.f32 %v1691, %v1696
    %v1698 = vadd.f32 %v1692, %v1696
    %v1699 = vsel %vm96, %v1697, 0.0
    %1700 = vadd.xlane.f32.xlu0 %v1699
    %v1701 = vpop.xlane.xlu0 %1700
    %v1702 = vsel %vm96, %v1698, 0.0
    %1703 = vadd.xlane.f32.xlu0 %v1702
    %v1704 = vpop.xlane.xlu0 %1703
    %v1705 = vmul.f32 %v1701, %v103
    %v1706 = vmul.f32 %v1704, %v103
    %v1707 = vsub.f32 %v1697, %v1705
    %v1708 = vsub.f32 %v1698, %v1706
    %v1709 = vmul.f32 %v1707, %v1707
    %v1710 = vmul.f32 %v1708, %v1708
    %v1711 = vsel %vm96, %v1709, 0.0
    %1712 = vadd.xlane.f32.xlu0 %v1711
    %v1713 = vpop.xlane.xlu0 %1712
    %v1714 = vsel %vm96, %v1710, 0.0
    %1715 = vadd.xlane.f32.xlu0 %v1714
    %v1716 = vpop.xlane.xlu0 %1715
    %v1717 = vmul.f32 %v1713, %v103
    %v1718 = vmul.f32 %v1716, %v103
    %v1719 = vadd.f32 %v1717, 1e-05
    %v1720 = vadd.f32 %v1718, 1e-05
    %v1721 = vrsqrt.pop %v1719
    %v1722 = vrsqrt.pop %v1720
    %v1723 = vmul.f32 %v1707, %v1721
    %v1724 = vmul.f32 %v1708, %v1722
    %v1725 = vlaneseq
    %v1726 = vshrl.u32 %v1725, 7
    %v1727 = vsub.s32 4, %v1726
    %v1728 = vrot.slane %v59, %v1727
    %v1729 = vmul.f32 %v1723, %v1728
    %v1730 = vmul.f32 %v1724, %v1728
    %v1731 = vlaneseq
    %v1732 = vshrl.u32 %v1731, 7
    %v1733 = vsub.s32 5, %v1732
    %v1734 = vrot.slane %v59, %v1733
    %v1735 = vadd.f32 %v1729, %v1734
    %v1736 = vadd.f32 %v1730, %v1734
    %v1737 = vpack.c.bf16 %v1736, %v1735
    %v1738 = vlaneseq
    %v1739 = vshrl.u32 %v1738, 7
    %v1740 = vsub.s32 0, %v1739
    %v1741 = vrot.slane %v60, %v1740
    %v1746 = vunpack.c.l.b16 %v997
    %v1747 = vunpack.c.l.b16 %v998
    %v1748 = vunpack.c.l.b16 %v999
    %v1749 = vunpack.c.l.b16 %v1000
    %v1750 = vpack.c.b16 %v1747, %v1746
    %v1751 = vpack.c.b16 %v1749, %v1748
    %v1755 = vsel %vm96, %v1737, 0
    %1757 = vmatprep.subr.bf16.mxu0 0
    %1758 = vmatpush1.bf16.msra.mxu0 %v1750
    %1759 = vmatprep.subr.bf16.mxu0 0
    %1760 = vmatpush1.bf16.msra.mxu0 %v1751
    %1761 = vmatprep.subr.bf16.mxu0 0
    %1762 = vmatpush1.bf16.msra.mxu0 0
    %1763 = vmatprep.subr.bf16.mxu0 0
    %1764 = vmatpush1.bf16.msra.mxu0 0
    %1765 = vmatprep.subr.bf16.mxu0 0
    %1766 = vmatpush1.bf16.msra.mxu0 0
    %1767 = vmatprep.subr.bf16.mxu0 0
    %1768 = vmatpush1.bf16.msra.mxu0 0
    %1769 = vmatprep.subr.bf16.mxu0 0
    %1770 = vmatpush1.bf16.msra.mxu0 0
    %1771 = vmatprep.subr.bf16.mxu0 0
    %1772 = vmatpush1.bf16.msra.mxu0 0
    %1773 = vmatprep.subr.bf16.mxu0 0
    %1774 = vmatpush1.bf16.msra.mxu0 0
    %1775 = vmatprep.subr.bf16.mxu0 0
    %1776 = vmatpush1.bf16.msra.mxu0 0
    %1777 = vmatprep.subr.bf16.mxu0 0
    %1778 = vmatpush1.bf16.msra.mxu0 0
    %1779 = vmatprep.subr.bf16.mxu0 0
    %1780 = vmatpush1.bf16.msra.mxu0 0
    %1781 = vmatprep.subr.bf16.mxu0 0
    %1782 = vmatpush1.bf16.msra.mxu0 0
    %1783 = vmatprep.subr.bf16.mxu0 0
    %1784 = vmatpush1.bf16.msra.mxu0 0
    %1785 = vmatprep.subr.bf16.mxu0 0
    %1786 = vmatpush1.bf16.msra.mxu0 0
    %1787 = vmatprep.subr.bf16.mxu0 0
    %1788 = vmatpush1.bf16.msra.mxu0 0
    %1789 = vmatprep.mubr.bf16.mxu0 0
    %1790 = vmatmul.mubr.bf16.gmra.mrb[0].mxu0 %v1755
    %v1791 = vpop.f32.mrb[0].mxu0
    %v1792 = vadd.f32 %v1741, %v1791
    %v1793 = vpop.f32.mrb[0].mxu0
    %v1794 = vpop.f32.mrb[0].mxu0
    %v1795 = vadd.f32 %v1741, %v1794
    %v1796 = vpop.f32.mrb[0].mxu0
    %1797 = vdwg.mxu0
    %v1798 = vmax.f32 %v1792, 0.0
    %v1799 = vmax.f32 %v1795, 0.0
    %v1800 = vpack.c.bf16 %v1799, %v1798
    %v1801 = vlaneseq
    %v1802 = vshrl.u32 %v1801, 7
    %v1803 = vsub.s32 1, %v1802
    %v1804 = vrot.slane %v60, %v1803
    %v1821 = vunpack.c.l.b16 %v1001
    %v1822 = vunpack.c.l.b16 %v1002
    %v1823 = vunpack.c.l.b16 %v1003
    %v1824 = vunpack.c.l.b16 %v1004
    %v1825 = vunpack.c.l.b16 %v1005
    %v1826 = vunpack.c.l.b16 %v1006
    %v1827 = vunpack.c.l.b16 %v1007
    %v1828 = vunpack.c.l.b16 %v1008
    %v1829 = vunpack.c.l.b16 %v1009
    %v1830 = vunpack.c.l.b16 %v1010
    %v1831 = vunpack.c.l.b16 %v1011
    %v1832 = vunpack.c.l.b16 %v1012
    %v1833 = vunpack.c.l.b16 %v1013
    %v1834 = vunpack.c.l.b16 %v1014
    %v1835 = vunpack.c.l.b16 %v1015
    %v1836 = vunpack.c.l.b16 %v1016
    %v1837 = vpack.c.b16 %v1822, %v1821
    %v1838 = vpack.c.b16 %v1824, %v1823
    %v1839 = vpack.c.b16 %v1826, %v1825
    %v1840 = vpack.c.b16 %v1828, %v1827
    %v1841 = vpack.c.b16 %v1830, %v1829
    %v1842 = vpack.c.b16 %v1832, %v1831
    %v1843 = vpack.c.b16 %v1834, %v1833
    %v1844 = vpack.c.b16 %v1836, %v1835
    %1853 = vmatprep.subr.bf16.mxu0 0
    %1854 = vmatpush1.bf16.msra.mxu0 %v1837
    %1855 = vmatprep.subr.bf16.mxu0 0
    %1856 = vmatpush1.bf16.msra.mxu0 %v1838
    %1857 = vmatprep.subr.bf16.mxu0 0
    %1858 = vmatpush1.bf16.msra.mxu0 %v1839
    %1859 = vmatprep.subr.bf16.mxu0 0
    %1860 = vmatpush1.bf16.msra.mxu0 %v1840
    %1861 = vmatprep.subr.bf16.mxu0 0
    %1862 = vmatpush1.bf16.msra.mxu0 %v1841
    %1863 = vmatprep.subr.bf16.mxu0 0
    %1864 = vmatpush1.bf16.msra.mxu0 %v1842
    %1865 = vmatprep.subr.bf16.mxu0 0
    %1866 = vmatpush1.bf16.msra.mxu0 %v1843
    %1867 = vmatprep.subr.bf16.mxu0 0
    %1868 = vmatpush1.bf16.msra.mxu0 %v1844
    %1869 = vmatprep.subr.bf16.mxu0 0
    %1870 = vmatpush1.bf16.msra.mxu0 0
    %1871 = vmatprep.subr.bf16.mxu0 0
    %1872 = vmatpush1.bf16.msra.mxu0 0
    %1873 = vmatprep.subr.bf16.mxu0 0
    %1874 = vmatpush1.bf16.msra.mxu0 0
    %1875 = vmatprep.subr.bf16.mxu0 0
    %1876 = vmatpush1.bf16.msra.mxu0 0
    %1877 = vmatprep.subr.bf16.mxu0 0
    %1878 = vmatpush1.bf16.msra.mxu0 0
    %1879 = vmatprep.subr.bf16.mxu0 0
    %1880 = vmatpush1.bf16.msra.mxu0 0
    %1881 = vmatprep.subr.bf16.mxu0 0
    %1882 = vmatpush1.bf16.msra.mxu0 0
    %1883 = vmatprep.subr.bf16.mxu0 0
    %1884 = vmatpush1.bf16.msra.mxu0 0
    %1885 = vmatprep.mubr.bf16.mxu0 0
    %1886 = vmatmul.mubr.bf16.gmra.mrb[0].mxu0 %v1800
    %v1887 = vpop.f32.mrb[0].mxu0
    %v1888 = vadd.f32 %v1804, %v1887
    %v1889 = vpop.f32.mrb[0].mxu0
    %v1890 = vpop.f32.mrb[0].mxu0
    %v1891 = vadd.f32 %v1804, %v1890
    %v1892 = vpop.f32.mrb[0].mxu0
    %1893 = vdwg.mxu0
    %v1894 = vadd.f32 %v987, %v1697
    %v1895 = vadd.f32 %v988, %v1698
    %v1896 = vadd.f32 %v1894, %v1888
    %v1897 = vadd.f32 %v1895, %v1891
    %v1899 = vsel %vm346, %v65, 0
    %1901 = vmatprep.subr.mxu0 0.0
    %1902 = vmatpush1.msra.mxu0 %v1896
    %1903 = vmatprep.subr.mxu0 0.0
    %1904 = vmatpush1.msra.mxu0 %v1897
    %1905 = vmatprep.subr.mxu0 0.0
    %1906 = vmatpush1.msra.mxu0 0.0
    %1907 = vmatprep.subr.mxu0 0.0
    %1908 = vmatpush1.msra.mxu0 0.0
    %1909 = vmatprep.subr.mxu0 0.0
    %1910 = vmatpush1.msra.mxu0 0.0
    %1911 = vmatprep.subr.mxu0 0.0
    %1912 = vmatpush1.msra.mxu0 0.0
    %1913 = vmatprep.subr.mxu0 0.0
    %1914 = vmatpush1.msra.mxu0 0.0
    %1915 = vmatprep.subr.mxu0 0.0
    %1916 = vmatpush1.msra.mxu0 0.0
    %1917 = vmatprep.subr.mxu0 0.0
    %1918 = vmatpush1.msra.mxu0 0.0
    %1919 = vmatprep.subr.mxu0 0.0
    %1920 = vmatpush1.msra.mxu0 0.0
    %1921 = vmatprep.subr.mxu0 0.0
    %1922 = vmatpush1.msra.mxu0 0.0
    %1923 = vmatprep.subr.mxu0 0.0
    %1924 = vmatpush1.msra.mxu0 0.0
    %1925 = vmatprep.subr.mxu0 0.0
    %1926 = vmatpush1.msra.mxu0 0.0
    %1927 = vmatprep.subr.mxu0 0.0
    %1928 = vmatpush1.msra.mxu0 0.0
    %1929 = vmatprep.subr.mxu0 0.0
    %1930 = vmatpush1.msra.mxu0 0.0
    %1931 = vmatprep.subr.mxu0 0.0
    %1932 = vmatpush1.msra.mxu0 0.0
    %1933 = vmatprep.subr.mxu0 0.0
    %1934 = vmatpush1.msra.mxu0 0.0
    %1935 = vmatprep.subr.mxu0 0.0
    %1936 = vmatpush1.msra.mxu0 0.0
    %1937 = vmatprep.subr.mxu0 0.0
    %1938 = vmatpush1.msra.mxu0 0.0
    %1939 = vmatprep.subr.mxu0 0.0
    %1940 = vmatpush1.msra.mxu0 0.0
    %1941 = vmatprep.subr.mxu0 0.0
    %1942 = vmatpush1.msra.mxu0 0.0
    %1943 = vmatprep.subr.mxu0 0.0
    %1944 = vmatpush1.msra.mxu0 0.0
    %1945 = vmatprep.subr.mxu0 0.0
    %1946 = vmatpush1.msra.mxu0 0.0
    %1947 = vmatprep.subr.mxu0 0.0
    %1948 = vmatpush1.msra.mxu0 0.0
    %1949 = vmatprep.subr.mxu0 0.0
    %1950 = vmatpush1.msra.mxu0 0.0
    %1951 = vmatprep.subr.mxu0 0.0
    %1952 = vmatpush1.msra.mxu0 0.0
    %1953 = vmatprep.subr.mxu0 0.0
    %1954 = vmatpush1.msra.mxu0 0.0
    %1955 = vmatprep.subr.mxu0 0.0
    %1956 = vmatpush1.msra.mxu0 0.0
    %1957 = vmatprep.subr.mxu0 0.0
    %1958 = vmatpush1.msra.mxu0 0.0
    %1959 = vmatprep.subr.mxu0 0.0
    %1960 = vmatpush1.msra.mxu0 0.0
    %1961 = vmatprep.subr.mxu0 0.0
    %1962 = vmatpush1.msra.mxu0 0.0
    %1963 = vmatprep.subr.mxu0 0.0
    %1964 = vmatpush1.msra.mxu0 0.0
    %1965 = vmatprep.mubr.f32.mxu0 0.0
    %1966 = vmatmul.mubr.f32.gmra.mrb[0].mxu0 %v1899
    %v1967 = vpop.f32.mrb[0].mxu0
    %v1968 = vadd.f32 0.0, %v1967
    %v1969 = vpop.f32.mrb[0].mxu0
    %1970 = vdwg.mxu0
    %v1971 = vlaneseq
    %v1972 = vshrl.u32 %v1971, 7
    %v1973 = vsub.s32 2, %v1972
    %v1974 = vrot.slane %v60, %v1973
    %v1976 = vsel %vm96, %v1968, 0
    %1978 = vmatprep.subr.mxu0 0.0
    %1979 = vmatpush1.msra.mxu0 %v61
    %1980 = vmatprep.subr.mxu0 0.0
    %1981 = vmatpush1.msra.mxu0 %v62
    %1982 = vmatprep.subr.mxu0 0.0
    %1983 = vmatpush1.msra.mxu0 %v63
    %1984 = vmatprep.subr.mxu0 0.0
    %1985 = vmatpush1.msra.mxu0 %v64
    %1986 = vmatprep.subr.mxu0 0.0
    %1987 = vmatpush1.msra.mxu0 0.0
    %1988 = vmatprep.subr.mxu0 0.0
    %1989 = vmatpush1.msra.mxu0 0.0
    %1990 = vmatprep.subr.mxu0 0.0
    %1991 = vmatpush1.msra.mxu0 0.0
    %1992 = vmatprep.subr.mxu0 0.0
    %1993 = vmatpush1.msra.mxu0 0.0
    %1994 = vmatprep.subr.mxu0 0.0
    %1995 = vmatpush1.msra.mxu0 0.0
    %1996 = vmatprep.subr.mxu0 0.0
    %1997 = vmatpush1.msra.mxu0 0.0
    %1998 = vmatprep.subr.mxu0 0.0
    %1999 = vmatpush1.msra.mxu0 0.0
    %2000 = vmatprep.subr.mxu0 0.0
    %2001 = vmatpush1.msra.mxu0 0.0
    %2002 = vmatprep.subr.mxu0 0.0
    %2003 = vmatpush1.msra.mxu0 0.0
    %2004 = vmatprep.subr.mxu0 0.0
    %2005 = vmatpush1.msra.mxu0 0.0
    %2006 = vmatprep.subr.mxu0 0.0
    %2007 = vmatpush1.msra.mxu0 0.0
    %2008 = vmatprep.subr.mxu0 0.0
    %2009 = vmatpush1.msra.mxu0 0.0
    %2010 = vmatprep.subr.mxu0 0.0
    %2011 = vmatpush1.msra.mxu0 0.0
    %2012 = vmatprep.subr.mxu0 0.0
    %2013 = vmatpush1.msra.mxu0 0.0
    %2014 = vmatprep.subr.mxu0 0.0
    %2015 = vmatpush1.msra.mxu0 0.0
    %2016 = vmatprep.subr.mxu0 0.0
    %2017 = vmatpush1.msra.mxu0 0.0
    %2018 = vmatprep.subr.mxu0 0.0
    %2019 = vmatpush1.msra.mxu0 0.0
    %2020 = vmatprep.subr.mxu0 0.0
    %2021 = vmatpush1.msra.mxu0 0.0
    %2022 = vmatprep.subr.mxu0 0.0
    %2023 = vmatpush1.msra.mxu0 0.0
    %2024 = vmatprep.subr.mxu0 0.0
    %2025 = vmatpush1.msra.mxu0 0.0
    %2026 = vmatprep.subr.mxu0 0.0
    %2027 = vmatpush1.msra.mxu0 0.0
    %2028 = vmatprep.subr.mxu0 0.0
    %2029 = vmatpush1.msra.mxu0 0.0
    %2030 = vmatprep.subr.mxu0 0.0
    %2031 = vmatpush1.msra.mxu0 0.0
    %2032 = vmatprep.subr.mxu0 0.0
    %2033 = vmatpush1.msra.mxu0 0.0
    %2034 = vmatprep.subr.mxu0 0.0
    %2035 = vmatpush1.msra.mxu0 0.0
    %2036 = vmatprep.subr.mxu0 0.0
    %2037 = vmatpush1.msra.mxu0 0.0
    %2038 = vmatprep.subr.mxu0 0.0
    %2039 = vmatpush1.msra.mxu0 0.0
    %2040 = vmatprep.subr.mxu0 0.0
    %2041 = vmatpush1.msra.mxu0 0.0
    %2042 = vmatprep.mubr.f32.mxu0 0.0
    %2043 = vmatmul.mubr.f32.gmra.mrb[0].mxu0 %v1976
    %v2044 = vpop.f32.mrb[0].mxu0
    %v2045 = vadd.f32 %v1974, %v2044
    %v2046 = vpop.f32.mrb[0].mxu0
    %2047 = vdwg.mxu0
    %v2048 = vsel %vm96, %v1896, 0.0
    %v2049 = vsel %vm96, %v1897, 0.0
    %2051 = vrot.lane.b32.xlu0 %v2045, 32
    %v2052 = vpop.permute.xlu0 %2051
    %v2054 = vsel %vm96, %v1968, %v2052
    %vm2055 = vcmask 310272
    %v2056 = vsel %vm2055, %v2054, 0.0
    %vm2057 = vcmask 1041408
    %v2058 = vsel %vm2057, %v2056, 0.0
    %2059 = vst [vmem:[%s3] sm:$0xff] %v2048
    %2060 = vst [vmem:[%s3 + $0x8] sm:$0xff] %v2049
    %2061 = vst [vmem:[%s3 + $0x10] sm:$0xff] %v2058
    // Predicated region
    $region26: #{model_forward.1} parent=1 // pred_check
      _
    $region27: #{model_forward.1} parent=1 // pred_check_branch
      %2063 = sbr.rel (0) target = $region29
    $region28: #{model_forward.1} parent=1 // pred_region
      _
    $region29: #{model_forward.1} parent=1 // pred_fallthru
      _
    // Predicated region
    $region30: #{model_forward.1} parent=1 // pred_check
      _
    $region31: #{model_forward.1} parent=1 // pred_check_branch
      %2065 = sbr.rel (0) target = $region33
    $region32: #{model_forward.1} parent=1 // pred_region
      _
    $region33: #{model_forward.1} parent=1 // pred_fallthru
      _
    %2066 = vsyncpa [#allocation3], 1
    %2067 = vsyncpa [#allocation5], 1

</llo_original>
